<compile_context>
chip_gen: v7x
topology: tpu7x:2x2x1
jax: 0.10.0
libtpu: 0.0.40
codegen_flags: <defaults>
</compile_context>

<pallas_src>
from functools import partial

import jax
import jax.numpy as jnp
from jax import lax
from jax.experimental import pallas as pl
from jax.experimental.pallas import tpu as pltpu


# ------------------------------------------------------------------- utils --
def _round_up(x, m):
    return (x + m - 1) // m * m


def _vmem_budget_bytes():
    """~75% of this generation's per-core VMEM (v7x: 64 MiB, v5e/v6e: 128 MiB)."""
    cap = 64 << 20                       # conservative default == v7x
    try:
        cap = int(pltpu.get_tpu_info().vmem_capacity_bytes)
    except Exception:
        pass
    return (cap * 3) // 4


def _vmem_limit(need_bytes, budget):
    return int(min(budget, max(need_bytes, 16 << 20)))


_P1_TARGET_BYTES = 4 << 20   # pass-1 x-block sweet spot (HBM-roofline ~85% zone)
_FUSE_IN_LIMIT = 4 << 20     # max padded per-image x block for the fused path


# ------------------------------------------------------------ conv helper --
def _conv7x7_sigmoid(pad_ref, w_ref, H, W, ksize):
    """2-in/1-out KxK cross-correlation + sigmoid on a zero-padded f32 scratch.
    Two independent accumulators (one per input channel) so the 2*K*K FMAs are
    not one serial VPU dependence chain."""
    # TODO(synk): for large H*W, replace the lane-unaligned slice reads with
    # pltpu.roll-based shifts (XLU) or banded-Toeplitz MXU matmuls.
    acc0 = jnp.zeros((H, W), jnp.float32)
    acc1 = jnp.zeros((H, W), jnp.float32)
    for ky in range(ksize):
        b0 = ky * ksize
        b1 = (ksize + ky) * ksize
        for kx in range(ksize):
            acc0 = acc0 + w_ref[b0 + kx] * pad_ref[0, ky:ky + H, kx:kx + W]
            acc1 = acc1 + w_ref[b1 + kx] * pad_ref[1, ky:ky + H, kx:kx + W]
    return jax.nn.sigmoid(acc0 + acc1)


# ------------------------------------------------------------ fused kernel --
def _fused_kernel(x_ref, w_ref, o_ref, pad_ref, *, ksize):
    """x_ref: (1, C, H, W); w_ref: (2*K*K,) f32 in SMEM; o_ref: (1, 1, H, W);
    pad_ref: (2, H+2p, W+2p) f32 VMEM scratch (zero border == conv padding)."""
    H, W = o_ref.shape[2], o_ref.shape[3]
    p = ksize // 2
    xs = x_ref[0]                                               # (C, H, W)
    c = xs.shape[0]
    avg = jnp.sum(xs, axis=0, dtype=jnp.float32) * (1.0 / c)    # (H, W)
    mx = jnp.max(xs, axis=0).astype(jnp.float32)                # (H, W)
    pad_ref[...] = jnp.zeros_like(pad_ref)
    pad_ref[0, p:p + H, p:p + W] = avg
    pad_ref[1, p:p + H, p:p + W] = mx
    o_ref[0, 0] = _conv7x7_sigmoid(pad_ref, w_ref, H, W, ksize).astype(o_ref.dtype)


# --------------------------------------------------- pass 1: channel stats --
def _chan_stats_kernel(x_ref, o_ref, acc_ref, *, c_total):
    """x_ref: (1, Ct, T) lane-dense tile of x; o_ref: (1, 2, T) (row0=mean,
    row1=max); acc_ref: (2, T) f32 accumulator (sum, running max)."""
    ci = pl.program_id(2)
    xs = x_ref[0]                                                  # (Ct, T)
    psum = jnp.sum(xs, axis=0, keepdims=True, dtype=jnp.float32)   # (1, T)
    pmax = jnp.max(xs, axis=0, keepdims=True).astype(jnp.float32)  # (1, T)

    @pl.when(ci == 0)
    def _():
        acc_ref[0:1, :] = psum
        acc_ref[1:2, :] = pmax

    @pl.when(ci > 0)
    def _():
        acc_ref[0:1, :] = acc_ref[0:1, :] + psum
        acc_ref[1:2, :] = jnp.maximum(acc_ref[1:2, :], pmax)

    @pl.when(ci == pl.num_programs(2) - 1)
    def _():
        acc_ref[0:1, :] = acc_ref[0:1, :] * (1.0 / c_total)
        o_ref[0] = acc_ref[...].astype(o_ref.dtype)     # single merged store


# ------------------------------------------------- pass 2: 7x7 conv + sigm --
def _spatial_conv_kernel(m_ref, w_ref, o_ref, pad_ref, *, ksize):
    """m_ref: (1, 2, H, W) avg/max maps; o_ref: (1, 1, H, W) attention map."""
    H, W = o_ref.shape[2], o_ref.shape[3]
    p = ksize // 2
    pad_ref[...] = jnp.zeros_like(pad_ref)
    pad_ref[0, p:p + H, p:p + W] = m_ref[0, 0].astype(jnp.float32)
    pad_ref[1, p:p + H, p:p + W] = m_ref[0, 1].astype(jnp.float32)
    o_ref[0, 0] = _conv7x7_sigmoid(pad_ref, w_ref, H, W, ksize).astype(o_ref.dtype)


# --------------------------------------------------------------- planning --
def _plan_pass1(C, HW, itemsize, budget):
    """Pick (channel_tile, hw_tile) so the pass-1 x block lands near the
    ~4 MiB HBM-roofline sweet spot, obeying (8,128)/full-extent constraints."""
    target = min(_P1_TARGET_BYTES, max(budget // 4, 1 << 20))

    def blk(ct, t):      # padded VMEM footprint of one (ct, t) tile
        return _round_up(ct, 8) * _round_up(t, 128) * itemsize

    if HW % 128 == 0:
        t_cands = sorted((t for t in range(128, HW + 1, 128) if HW % t == 0),
                         reverse=True)
    else:
        t_cands = [HW]               # full extent is the only legal lane tile

    t = next((tt for tt in t_cands if blk(C, tt) <= target), t_cands[-1])
    ct = C
    if blk(C, t) > target:           # still too big -> tile channels as well
        c_cands = sorted((c for c in range(8, C, 8) if C % c == 0), reverse=True)
        if c_cands:
            ct = next((cc for cc in c_cands if blk(cc, t) <= target), c_cands[-1])
    return ct, t


# ---------------------------------------------------------------- wrapper --
@partial(jax.jit, static_argnames=("force_two_pass", "p1_block"))
def spatial_attention(x, conv_w, *, force_two_pass=False, p1_block=None):
    """x: (B, C, H, W); conv_w: (1, 2, K, K) conv weight (no bias).
    Returns sigmoid(conv7x7(cat(mean_c(x), max_c(x)))) of shape (B, 1, H, W),
    matching PyTorch SpatialAttention.forward (the map itself, not x * map)."""
    B, C, H, W = x.shape
    K = conv_w.shape[-1]
    p = K // 2
    HW = H * W
    itemsize = jnp.dtype(x.dtype).itemsize
    budget = _vmem_budget_bytes()
    w_flat = conv_w.reshape(-1).astype(jnp.float32)          # (2*K*K,) -> SMEM

    pad_scr_bytes = 2 * _round_up(H + 2 * p, 8) * _round_up(W + 2 * p, 128) * 4
    out_blk_bytes = _round_up(H, 8) * _round_up(W, 128) * itemsize
    x_img_bytes = C * _round_up(H, 8) * _round_up(W, 128) * itemsize

    # Fuse stats + conv when the maps round trip would be a large fraction of
    # the x read (small C) or the per-image 4-D x block is DMA-friendly anyway.
    fuse = (x_img_bytes <= _FUSE_IN_LIMIT
            and (C * itemsize <= 64 or W * itemsize >= 512))

    if fuse and not force_two_pass:
        need = 2 * x_img_bytes + 2 * out_blk_bytes + pad_scr_bytes + (4 << 20)
        return pl.pallas_call(
            partial(_fused_kernel, ksize=K),
            out_shape=jax.ShapeDtypeStruct((B, 1, H, W), x.dtype),
            grid=(B,),
            in_specs=[pl.BlockSpec((1, C, H, W), lambda b: (b, 0, 0, 0)),
                      pl.BlockSpec(memory_space=pltpu.MemorySpace.SMEM)],
            out_specs=pl.BlockSpec((1, 1, H, W), lambda b: (b, 0, 0, 0)),
            scratch_shapes=[pltpu.VMEM((2, H + 2 * p, W + 2 * p), jnp.float32)],
            compiler_params=pltpu.CompilerParams(
                dimension_semantics=("parallel",),
                vmem_limit_bytes=_vmem_limit(need, budget)),
            cost_estimate=pl.CostEstimate(
                flops=B * HW * (2 * C + 4 * K * K),
                transcendentals=B * HW,
                bytes_accessed=B * C * HW * itemsize + B * HW * itemsize
                               + 2 * K * K * 4),
        )(x, w_flat)

    # ------------- pass 1: channel mean & max, lane-dense over H*W ----------
    x_flat = x.reshape(B, C, HW)                 # free reshape (contiguous)
    if p1_block is not None:
        ct, t = p1_block
    else:
        ct, t = _plan_pass1(C, HW, itemsize, budget)
    n_t, n_c = HW // t, C // ct
    in_blk = _round_up(ct, 8) * _round_up(t, 128) * itemsize
    map_blk = 8 * _round_up(t, 128) * itemsize
    need1 = 2 * in_blk + 2 * map_blk + 8 * _round_up(t, 128) * 4 + (4 << 20)

    maps = pl.pallas_call(
        partial(_chan_stats_kernel, c_total=C),
        out_shape=jax.ShapeDtypeStruct((B, 2, HW), x.dtype),
        grid=(B, n_t, n_c),
        in_specs=[pl.BlockSpec((1, ct, t), lambda b, ti, ci: (b, ci, ti))],
        out_specs=pl.BlockSpec((1, 2, t), lambda b, ti, ci: (b, 0, ti)),
        scratch_shapes=[pltpu.VMEM((2, t), jnp.float32)],
        compiler_params=pltpu.CompilerParams(
            dimension_semantics=("parallel", "parallel", "arbitrary"),
            vmem_limit_bytes=_vmem_limit(need1, budget)),
        cost_estimate=pl.CostEstimate(
            flops=2 * B * C * HW,
            transcendentals=0,
            bytes_accessed=B * C * HW * itemsize + B * 2 * HW * itemsize),
    )(x_flat)

    # ------------- pass 2: 7x7 conv (pad=3, no bias) + sigmoid --------------
    maps4d = maps.reshape(B, 2, H, W)            # free reshape
    map_img = 2 * _round_up(H, 8) * _round_up(W, 128) * itemsize
    need2 = 2 * map_img + 2 * out_blk_bytes + pad_scr_bytes + (4 << 20)
    return pl.pallas_call(
        partial(_spatial_conv_kernel, ksize=K),
        out_shape=jax.ShapeDtypeStruct((B, 1, H, W), x.dtype),
        grid=(B,),
        in_specs=[pl.BlockSpec((1, 2, H, W), lambda b: (b, 0, 0, 0)),
                  pl.BlockSpec(memory_space=pltpu.MemorySpace.SMEM)],
        out_specs=pl.BlockSpec((1, 1, H, W), lambda b: (b, 0, 0, 0)),
        scratch_shapes=[pltpu.VMEM((2, H + 2 * p, W + 2 * p), jnp.float32)],
        compiler_params=pltpu.CompilerParams(
            dimension_semantics=("parallel",),
            vmem_limit_bytes=_vmem_limit(need2, budget)),
        cost_estimate=pl.CostEstimate(
            flops=4 * B * K * K * HW,
            transcendentals=B * HW,
            bytes_accessed=B * 2 * HW * itemsize + B * HW * itemsize
                           + 2 * K * K * 4),
    )(maps4d, w_flat)


# --------------------------------------------------------------- reference --
def _reference_spatial_attention(x, conv_w):
    xf = x.astype(jnp.float32)
    avg = jnp.mean(xf, axis=1, keepdims=True)
    mx = jnp.max(xf, axis=1, keepdims=True)
    cat = jnp.concatenate([avg, mx], axis=1)                     # (B,2,H,W)
    p = conv_w.shape[-1] // 2
    out = lax.conv_general_dilated(
        cat, conv_w.astype(jnp.float32), window_strides=(1, 1),
        padding=((p, p), (p, p)),
        dimension_numbers=("NCHW", "OIHW", "NCHW"))
    return jax.nn.sigmoid(out).astype(x.dtype)


if __name__ == "__main__":
    key = jax.random.PRNGKey(0)
    ksize = 7
    B, H, W = 2, 16, 16
    k_x, k_w, k_x2 = jax.random.split(key, 3)

    # nn.Conv2d(2, 1, 7, padding=3, bias=False) weight layout: (out=1, in=2, 7, 7)
    conv_w = jax.random.normal(k_w, (1, 2, ksize, ksize), dtype=jnp.float32) * 0.1

    # Case 1: small channel count -> fused single-kernel path.
    C = 4
    x = jax.random.normal(k_x, (B, C, H, W), dtype=jnp.float32)
    out = spatial_attention(x, conv_w)
    jax.block_until_ready(out)
    ref = _reference_spatial_attention(x, conv_w)
    assert out.shape == (B, 1, H, W)
    assert jnp.allclose(out, ref, atol=1e-5, rtol=1e-5), "fused path mismatch"

    # Case 2: exercise the two-pass path with channel + hw tiling (accumulator).
    C2 = 16
    x2 = jax.random.normal(k_x2, (B, C2, H, W), dtype=jnp.float32)
    out2 = spatial_attention(x2, conv_w, force_two_pass=True, p1_block=(8, 128))
    jax.block_until_ready(out2)
    ref2 = _reference_spatial_attention(x2, conv_w)
    assert jnp.allclose(out2, ref2, atol=1e-5, rtol=1e-5), "two-pass mismatch"

    print("KERNEL_OK")
</pallas_src>

<mosaic_0001>
module attributes {stable_mosaic.version = 11 : i64} {
  func.func @_fused_kernel(%arg0: i32, %arg1: memref<1x4x16x16xf32, #tpu.memory_space<vmem>>, %arg2: memref<98xf32, #tpu.memory_space<smem>>, %arg3: memref<1x1x16x16xf32, #tpu.memory_space<vmem>>, %arg4: memref<2x22x22xf32, #tpu.memory_space<vmem>>) attributes {dimension_semantics = [#tpu.dimension_semantics<parallel>], iteration_bounds = array<i64: 2>, scalar_prefetch = 0 : i64, scratch_operands = 1 : i64, tpu.core_type = #tpu.core_type<tc>, window_params = [{transform_indices = @transform_0, window_bounds = array<i64: 1, 4, 16, 16>}, {transform_indices = @transform_1, window_bounds = array<i64: 98>}, {transform_indices = @transform_2, window_bounds = array<i64: 1, 1, 16, 16>}]} {
    %c0 = arith.constant 0 : index
    %c0_0 = arith.constant 0 : index
    %c0_1 = arith.constant 0 : index
    %c0_2 = arith.constant 0 : index
    %0 = vector.load %arg1[%c0, %c0_0, %c0_1, %c0_2] : memref<1x4x16x16xf32, #tpu.memory_space<vmem>>, vector<1x4x16x16xf32>
    %1 = vector.shape_cast %0 : vector<1x4x16x16xf32> to vector<4x16x16xf32>
    %cst = arith.constant dense<0.000000e+00> : vector<16x16xf32>
    %2 = vector.multi_reduction <add>, %1, %cst [0] : vector<4x16x16xf32> to vector<16x16xf32>
    %cst_3 = arith.constant 2.500000e-01 : f32
    %3 = vector.broadcast %cst_3 : f32 to vector<16x16xf32>
    %4 = arith.mulf %2, %3 : vector<16x16xf32>
    %cst_4 = arith.constant dense<0xFF800000> : vector<16x16xf32>
    %5 = vector.multi_reduction <maximumf>, %1, %cst_4 [0] : vector<4x16x16xf32> to vector<16x16xf32>
    %cst_5 = arith.constant 0.000000e+00 : f32
    %6 = vector.broadcast %cst_5 : f32 to vector<2x22x22xf32>
    %c0_6 = arith.constant 0 : index
    %c0_7 = arith.constant 0 : index
    %c0_8 = arith.constant 0 : index
    %7 = vector.load %arg4[%c0_6, %c0_7, %c0_8] : memref<2x22x22xf32, #tpu.memory_space<vmem>>, vector<2x22x22xf32>
    tpu.vector_store %arg4[%c0_6, %c0_7, %c0_8], %6 {strides = array<i32>} : memref<2x22x22xf32, #tpu.memory_space<vmem>>, vector<2x22x22xf32>,
    %c0_9 = arith.constant 0 : index
    %c3 = arith.constant 3 : index
    %c3_10 = arith.constant 3 : index
    %8 = vector.load %arg4[%c0_9, %c3, %c3_10] : memref<2x22x22xf32, #tpu.memory_space<vmem>>, vector<1x16x16xf32>
    %9 = vector.shape_cast %8 : vector<1x16x16xf32> to vector<16x16xf32>
    %10 = vector.shape_cast %4 : vector<16x16xf32> to vector<1x16x16xf32>
    tpu.vector_store %arg4[%c0_9, %c3, %c3_10], %10 {strides = array<i32>} : memref<2x22x22xf32, #tpu.memory_space<vmem>>, vector<1x16x16xf32>,
    %c1 = arith.constant 1 : index
    %c3_11 = arith.constant 3 : index
    %c3_12 = arith.constant 3 : index
    %11 = vector.load %arg4[%c1, %c3_11, %c3_12] : memref<2x22x22xf32, #tpu.memory_space<vmem>>, vector<1x16x16xf32>
    %12 = vector.shape_cast %11 : vector<1x16x16xf32> to vector<16x16xf32>
    %13 = vector.shape_cast %5 : vector<16x16xf32> to vector<1x16x16xf32>
    tpu.vector_store %arg4[%c1, %c3_11, %c3_12], %13 {strides = array<i32>} : memref<2x22x22xf32, #tpu.memory_space<vmem>>, vector<1x16x16xf32>,
    %cst_13 = arith.constant 0.000000e+00 : f32
    %14 = vector.broadcast %cst_13 : f32 to vector<16x16xf32>
    %cst_14 = arith.constant 0.000000e+00 : f32
    %15 = vector.broadcast %cst_14 : f32 to vector<16x16xf32>
    %c0_15 = arith.constant 0 : index
    %16 = memref.load %arg2[%c0_15] : memref<98xf32, #tpu.memory_space<smem>>
    %c0_16 = arith.constant 0 : index
    %c0_17 = arith.constant 0 : index
    %c0_18 = arith.constant 0 : index
    %17 = vector.load %arg4[%c0_16, %c0_17, %c0_18] : memref<2x22x22xf32, #tpu.memory_space<vmem>>, vector<1x16x16xf32>
    %18 = vector.shape_cast %17 : vector<1x16x16xf32> to vector<16x16xf32>
    %19 = vector.broadcast %16 : f32 to vector<16x16xf32>
    %20 = arith.mulf %19, %18 : vector<16x16xf32>
    %21 = arith.addf %14, %20 : vector<16x16xf32>
    %c49 = arith.constant 49 : index
    %22 = memref.load %arg2[%c49] : memref<98xf32, #tpu.memory_space<smem>>
    %c1_19 = arith.constant 1 : index
    %c0_20 = arith.constant 0 : index
    %c0_21 = arith.constant 0 : index
    %23 = vector.load %arg4[%c1_19, %c0_20, %c0_21] : memref<2x22x22xf32, #tpu.memory_space<vmem>>, vector<1x16x16xf32>
    %24 = vector.shape_cast %23 : vector<1x16x16xf32> to vector<16x16xf32>
    %25 = vector.broadcast %22 : f32 to vector<16x16xf32>
    %26 = arith.mulf %25, %24 : vector<16x16xf32>
    %27 = arith.addf %15, %26 : vector<16x16xf32>
    %c1_22 = arith.constant 1 : index
    %28 = memref.load %arg2[%c1_22] : memref<98xf32, #tpu.memory_space<smem>>
    %c0_23 = arith.constant 0 : index
    %c0_24 = arith.constant 0 : index
    %c1_25 = arith.constant 1 : index
    %29 = vector.load %arg4[%c0_23, %c0_24, %c1_25] : memref<2x22x22xf32, #tpu.memory_space<vmem>>, vector<1x16x16xf32>
    %30 = vector.shape_cast %29 : vector<1x16x16xf32> to vector<16x16xf32>
    %31 = vector.broadcast %28 : f32 to vector<16x16xf32>
    %32 = arith.mulf %31, %30 : vector<16x16xf32>
    %33 = arith.addf %21, %32 : vector<16x16xf32>
    %c50 = arith.constant 50 : index
    %34 = memref.load %arg2[%c50] : memref<98xf32, #tpu.memory_space<smem>>
    %c1_26 = arith.constant 1 : index
    %c0_27 = arith.constant 0 : index
    %c1_28 = arith.constant 1 : index
    %35 = vector.load %arg4[%c1_26, %c0_27, %c1_28] : memref<2x22x22xf32, #tpu.memory_space<vmem>>, vector<1x16x16xf32>
    %36 = vector.shape_cast %35 : vector<1x16x16xf32> to vector<16x16xf32>
    %37 = vector.broadcast %34 : f32 to vector<16x16xf32>
    %38 = arith.mulf %37, %36 : vector<16x16xf32>
    %39 = arith.addf %27, %38 : vector<16x16xf32>
    %c2 = arith.constant 2 : index
    %40 = memref.load %arg2[%c2] : memref<98xf32, #tpu.memory_space<smem>>
    %c0_29 = arith.constant 0 : index
    %c0_30 = arith.constant 0 : index
    %c2_31 = arith.constant 2 : index
    %41 = vector.load %arg4[%c0_29, %c0_30, %c2_31] : memref<2x22x22xf32, #tpu.memory_space<vmem>>, vector<1x16x16xf32>
    %42 = vector.shape_cast %41 : vector<1x16x16xf32> to vector<16x16xf32>
    %43 = vector.broadcast %40 : f32 to vector<16x16xf32>
    %44 = arith.mulf %43, %42 : vector<16x16xf32>
    %45 = arith.addf %33, %44 : vector<16x16xf32>
    %c51 = arith.constant 51 : index
    %46 = memref.load %arg2[%c51] : memref<98xf32, #tpu.memory_space<smem>>
    %c1_32 = arith.constant 1 : index
    %c0_33 = arith.constant 0 : index
    %c2_34 = arith.constant 2 : index
    %47 = vector.load %arg4[%c1_32, %c0_33, %c2_34] : memref<2x22x22xf32, #tpu.memory_space<vmem>>, vector<1x16x16xf32>
    %48 = vector.shape_cast %47 : vector<1x16x16xf32> to vector<16x16xf32>
    %49 = vector.broadcast %46 : f32 to vector<16x16xf32>
    %50 = arith.mulf %49, %48 : vector<16x16xf32>
    %51 = arith.addf %39, %50 : vector<16x16xf32>
    %c3_35 = arith.constant 3 : index
    %52 = memref.load %arg2[%c3_35] : memref<98xf32, #tpu.memory_space<smem>>
    %c0_36 = arith.constant 0 : index
    %c0_37 = arith.constant 0 : index
    %c3_38 = arith.constant 3 : index
    %53 = vector.load %arg4[%c0_36, %c0_37, %c3_38] : memref<2x22x22xf32, #tpu.memory_space<vmem>>, vector<1x16x16xf32>
    %54 = vector.shape_cast %53 : vector<1x16x16xf32> to vector<16x16xf32>
    %55 = vector.broadcast %52 : f32 to vector<16x16xf32>
    %56 = arith.mulf %55, %54 : vector<16x16xf32>
    %57 = arith.addf %45, %56 : vector<16x16xf32>
    %c52 = arith.constant 52 : index
    %58 = memref.load %arg2[%c52] : memref<98xf32, #tpu.memory_space<smem>>
    %c1_39 = arith.constant 1 : index
    %c0_40 = arith.constant 0 : index
    %c3_41 = arith.constant 3 : index
    %59 = vector.load %arg4[%c1_39, %c0_40, %c3_41] : memref<2x22x22xf32, #tpu.memory_space<vmem>>, vector<1x16x16xf32>
    %60 = vector.shape_cast %59 : vector<1x16x16xf32> to vector<16x16xf32>
    %61 = vector.broadcast %58 : f32 to vector<16x16xf32>
    %62 = arith.mulf %61, %60 : vector<16x16xf32>
    %63 = arith.addf %51, %62 : vector<16x16xf32>
    %c4 = arith.constant 4 : index
    %64 = memref.load %arg2[%c4] : memref<98xf32, #tpu.memory_space<smem>>
    %c0_42 = arith.constant 0 : index
    %c0_43 = arith.constant 0 : index
    %c4_44 = arith.constant 4 : index
    %65 = vector.load %arg4[%c0_42, %c0_43, %c4_44] : memref<2x22x22xf32, #tpu.memory_space<vmem>>, vector<1x16x16xf32>
    %66 = vector.shape_cast %65 : vector<1x16x16xf32> to vector<16x16xf32>
    %67 = vector.broadcast %64 : f32 to vector<16x16xf32>
    %68 = arith.mulf %67, %66 : vector<16x16xf32>
    %69 = arith.addf %57, %68 : vector<16x16xf32>
    %c53 = arith.constant 53 : index
    %70 = memref.load %arg2[%c53] : memref<98xf32, #tpu.memory_space<smem>>
    %c1_45 = arith.constant 1 : index
    %c0_46 = arith.constant 0 : index
    %c4_47 = arith.constant 4 : index
    %71 = vector.load %arg4[%c1_45, %c0_46, %c4_47] : memref<2x22x22xf32, #tpu.memory_space<vmem>>, vector<1x16x16xf32>
    %72 = vector.shape_cast %71 : vector<1x16x16xf32> to vector<16x16xf32>
    %73 = vector.broadcast %70 : f32 to vector<16x16xf32>
    %74 = arith.mulf %73, %72 : vector<16x16xf32>
    %75 = arith.addf %63, %74 : vector<16x16xf32>
    %c5 = arith.constant 5 : index
    %76 = memref.load %arg2[%c5] : memref<98xf32, #tpu.memory_space<smem>>
    %c0_48 = arith.constant 0 : index
    %c0_49 = arith.constant 0 : index
    %c5_50 = arith.constant 5 : index
    %77 = vector.load %arg4[%c0_48, %c0_49, %c5_50] : memref<2x22x22xf32, #tpu.memory_space<vmem>>, vector<1x16x16xf32>
    %78 = vector.shape_cast %77 : vector<1x16x16xf32> to vector<16x16xf32>
    %79 = vector.broadcast %76 : f32 to vector<16x16xf32>
    %80 = arith.mulf %79, %78 : vector<16x16xf32>
    %81 = arith.addf %69, %80 : vector<16x16xf32>
    %c54 = arith.constant 54 : index
    %82 = memref.load %arg2[%c54] : memref<98xf32, #tpu.memory_space<smem>>
    %c1_51 = arith.constant 1 : index
    %c0_52 = arith.constant 0 : index
    %c5_53 = arith.constant 5 : index
    %83 = vector.load %arg4[%c1_51, %c0_52, %c5_53] : memref<2x22x22xf32, #tpu.memory_space<vmem>>, vector<1x16x16xf32>
    %84 = vector.shape_cast %83 : vector<1x16x16xf32> to vector<16x16xf32>
    %85 = vector.broadcast %82 : f32 to vector<16x16xf32>
    %86 = arith.mulf %85, %84 : vector<16x16xf32>
    %87 = arith.addf %75, %86 : vector<16x16xf32>
    %c6 = arith.constant 6 : index
    %88 = memref.load %arg2[%c6] : memref<98xf32, #tpu.memory_space<smem>>
    %c0_54 = arith.constant 0 : index
    %c0_55 = arith.constant 0 : index
    %c6_56 = arith.constant 6 : index
    %89 = vector.load %arg4[%c0_54, %c0_55, %c6_56] : memref<2x22x22xf32, #tpu.memory_space<vmem>>, vector<1x16x16xf32>
    %90 = vector.shape_cast %89 : vector<1x16x16xf32> to vector<16x16xf32>
    %91 = vector.broadcast %88 : f32 to vector<16x16xf32>
    %92 = arith.mulf %91, %90 : vector<16x16xf32>
    %93 = arith.addf %81, %92 : vector<16x16xf32>
    %c55 = arith.constant 55 : index
    %94 = memref.load %arg2[%c55] : memref<98xf32, #tpu.memory_space<smem>>
    %c1_57 = arith.constant 1 : index
    %c0_58 = arith.constant 0 : index
    %c6_59 = arith.constant 6 : index
    %95 = vector.load %arg4[%c1_57, %c0_58, %c6_59] : memref<2x22x22xf32, #tpu.memory_space<vmem>>, vector<1x16x16xf32>
    %96 = vector.shape_cast %95 : vector<1x16x16xf32> to vector<16x16xf32>
    %97 = vector.broadcast %94 : f32 to vector<16x16xf32>
    %98 = arith.mulf %97, %96 : vector<16x16xf32>
    %99 = arith.addf %87, %98 : vector<16x16xf32>
    %c7 = arith.constant 7 : index
    %100 = memref.load %arg2[%c7] : memref<98xf32, #tpu.memory_space<smem>>
    %c0_60 = arith.constant 0 : index
    %c1_61 = arith.constant 1 : index
    %c0_62 = arith.constant 0 : index
    %101 = vector.load %arg4[%c0_60, %c1_61, %c0_62] : memref<2x22x22xf32, #tpu.memory_space<vmem>>, vector<1x16x16xf32>
    %102 = vector.shape_cast %101 : vector<1x16x16xf32> to vector<16x16xf32>
    %103 = vector.broadcast %100 : f32 to vector<16x16xf32>
    %104 = arith.mulf %103, %102 : vector<16x16xf32>
    %105 = arith.addf %93, %104 : vector<16x16xf32>
    %c56 = arith.constant 56 : index
    %106 = memref.load %arg2[%c56] : memref<98xf32, #tpu.memory_space<smem>>
    %c1_63 = arith.constant 1 : index
    %c1_64 = arith.constant 1 : index
    %c0_65 = arith.constant 0 : index
    %107 = vector.load %arg4[%c1_63, %c1_64, %c0_65] : memref<2x22x22xf32, #tpu.memory_space<vmem>>, vector<1x16x16xf32>
    %108 = vector.shape_cast %107 : vector<1x16x16xf32> to vector<16x16xf32>
    %109 = vector.broadcast %106 : f32 to vector<16x16xf32>
    %110 = arith.mulf %109, %108 : vector<16x16xf32>
    %111 = arith.addf %99, %110 : vector<16x16xf32>
    %c8 = arith.constant 8 : index
    %112 = memref.load %arg2[%c8] : memref<98xf32, #tpu.memory_space<smem>>
    %c0_66 = arith.constant 0 : index
    %c1_67 = arith.constant 1 : index
    %c1_68 = arith.constant 1 : index
    %113 = vector.load %arg4[%c0_66, %c1_67, %c1_68] : memref<2x22x22xf32, #tpu.memory_space<vmem>>, vector<1x16x16xf32>
    %114 = vector.shape_cast %113 : vector<1x16x16xf32> to vector<16x16xf32>
    %115 = vector.broadcast %112 : f32 to vector<16x16xf32>
    %116 = arith.mulf %115, %114 : vector<16x16xf32>
    %117 = arith.addf %105, %116 : vector<16x16xf32>
    %c57 = arith.constant 57 : index
    %118 = memref.load %arg2[%c57] : memref<98xf32, #tpu.memory_space<smem>>
    %c1_69 = arith.constant 1 : index
    %c1_70 = arith.constant 1 : index
    %c1_71 = arith.constant 1 : index
    %119 = vector.load %arg4[%c1_69, %c1_70, %c1_71] : memref<2x22x22xf32, #tpu.memory_space<vmem>>, vector<1x16x16xf32>
    %120 = vector.shape_cast %119 : vector<1x16x16xf32> to vector<16x16xf32>
    %121 = vector.broadcast %118 : f32 to vector<16x16xf32>
    %122 = arith.mulf %121, %120 : vector<16x16xf32>
    %123 = arith.addf %111, %122 : vector<16x16xf32>
    %c9 = arith.constant 9 : index
    %124 = memref.load %arg2[%c9] : memref<98xf32, #tpu.memory_space<smem>>
    %c0_72 = arith.constant 0 : index
    %c1_73 = arith.constant 1 : index
    %c2_74 = arith.constant 2 : index
    %125 = vector.load %arg4[%c0_72, %c1_73, %c2_74] : memref<2x22x22xf32, #tpu.memory_space<vmem>>, vector<1x16x16xf32>
    %126 = vector.shape_cast %125 : vector<1x16x16xf32> to vector<16x16xf32>
    %127 = vector.broadcast %124 : f32 to vector<16x16xf32>
    %128 = arith.mulf %127, %126 : vector<16x16xf32>
    %129 = arith.addf %117, %128 : vector<16x16xf32>
    %c58 = arith.constant 58 : index
    %130 = memref.load %arg2[%c58] : memref<98xf32, #tpu.memory_space<smem>>
    %c1_75 = arith.constant 1 : index
    %c1_76 = arith.constant 1 : index
    %c2_77 = arith.constant 2 : index
    %131 = vector.load %arg4[%c1_75, %c1_76, %c2_77] : memref<2x22x22xf32, #tpu.memory_space<vmem>>, vector<1x16x16xf32>
    %132 = vector.shape_cast %131 : vector<1x16x16xf32> to vector<16x16xf32>
    %133 = vector.broadcast %130 : f32 to vector<16x16xf32>
    %134 = arith.mulf %133, %132 : vector<16x16xf32>
    %135 = arith.addf %123, %134 : vector<16x16xf32>
    %c10 = arith.constant 10 : index
    %136 = memref.load %arg2[%c10] : memref<98xf32, #tpu.memory_space<smem>>
    %c0_78 = arith.constant 0 : index
    %c1_79 = arith.constant 1 : index
    %c3_80 = arith.constant 3 : index
    %137 = vector.load %arg4[%c0_78, %c1_79, %c3_80] : memref<2x22x22xf32, #tpu.memory_space<vmem>>, vector<1x16x16xf32>
    %138 = vector.shape_cast %137 : vector<1x16x16xf32> to vector<16x16xf32>
    %139 = vector.broadcast %136 : f32 to vector<16x16xf32>
    %140 = arith.mulf %139, %138 : vector<16x16xf32>
    %141 = arith.addf %129, %140 : vector<16x16xf32>
    %c59 = arith.constant 59 : index
    %142 = memref.load %arg2[%c59] : memref<98xf32, #tpu.memory_space<smem>>
    %c1_81 = arith.constant 1 : index
    %c1_82 = arith.constant 1 : index
    %c3_83 = arith.constant 3 : index
    %143 = vector.load %arg4[%c1_81, %c1_82, %c3_83] : memref<2x22x22xf32, #tpu.memory_space<vmem>>, vector<1x16x16xf32>
    %144 = vector.shape_cast %143 : vector<1x16x16xf32> to vector<16x16xf32>
    %145 = vector.broadcast %142 : f32 to vector<16x16xf32>
    %146 = arith.mulf %145, %144 : vector<16x16xf32>
    %147 = arith.addf %135, %146 : vector<16x16xf32>
    %c11 = arith.constant 11 : index
    %148 = memref.load %arg2[%c11] : memref<98xf32, #tpu.memory_space<smem>>
    %c0_84 = arith.constant 0 : index
    %c1_85 = arith.constant 1 : index
    %c4_86 = arith.constant 4 : index
    %149 = vector.load %arg4[%c0_84, %c1_85, %c4_86] : memref<2x22x22xf32, #tpu.memory_space<vmem>>, vector<1x16x16xf32>
    %150 = vector.shape_cast %149 : vector<1x16x16xf32> to vector<16x16xf32>
    %151 = vector.broadcast %148 : f32 to vector<16x16xf32>
    %152 = arith.mulf %151, %150 : vector<16x16xf32>
    %153 = arith.addf %141, %152 : vector<16x16xf32>
    %c60 = arith.constant 60 : index
    %154 = memref.load %arg2[%c60] : memref<98xf32, #tpu.memory_space<smem>>
    %c1_87 = arith.constant 1 : index
    %c1_88 = arith.constant 1 : index
    %c4_89 = arith.constant 4 : index
    %155 = vector.load %arg4[%c1_87, %c1_88, %c4_89] : memref<2x22x22xf32, #tpu.memory_space<vmem>>, vector<1x16x16xf32>
    %156 = vector.shape_cast %155 : vector<1x16x16xf32> to vector<16x16xf32>
    %157 = vector.broadcast %154 : f32 to vector<16x16xf32>
    %158 = arith.mulf %157, %156 : vector<16x16xf32>
    %159 = arith.addf %147, %158 : vector<16x16xf32>
    %c12 = arith.constant 12 : index
    %160 = memref.load %arg2[%c12] : memref<98xf32, #tpu.memory_space<smem>>
    %c0_90 = arith.constant 0 : index
    %c1_91 = arith.constant 1 : index
    %c5_92 = arith.constant 5 : index
    %161 = vector.load %arg4[%c0_90, %c1_91, %c5_92] : memref<2x22x22xf32, #tpu.memory_space<vmem>>, vector<1x16x16xf32>
    %162 = vector.shape_cast %161 : vector<1x16x16xf32> to vector<16x16xf32>
    %163 = vector.broadcast %160 : f32 to vector<16x16xf32>
    %164 = arith.mulf %163, %162 : vector<16x16xf32>
    %165 = arith.addf %153, %164 : vector<16x16xf32>
    %c61 = arith.constant 61 : index
    %166 = memref.load %arg2[%c61] : memref<98xf32, #tpu.memory_space<smem>>
    %c1_93 = arith.constant 1 : index
    %c1_94 = arith.constant 1 : index
    %c5_95 = arith.constant 5 : index
    %167 = vector.load %arg4[%c1_93, %c1_94, %c5_95] : memref<2x22x22xf32, #tpu.memory_space<vmem>>, vector<1x16x16xf32>
    %168 = vector.shape_cast %167 : vector<1x16x16xf32> to vector<16x16xf32>
    %169 = vector.broadcast %166 : f32 to vector<16x16xf32>
    %170 = arith.mulf %169, %168 : vector<16x16xf32>
    %171 = arith.addf %159, %170 : vector<16x16xf32>
    %c13 = arith.constant 13 : index
    %172 = memref.load %arg2[%c13] : memref<98xf32, #tpu.memory_space<smem>>
    %c0_96 = arith.constant 0 : index
    %c1_97 = arith.constant 1 : index
    %c6_98 = arith.constant 6 : index
    %173 = vector.load %arg4[%c0_96, %c1_97, %c6_98] : memref<2x22x22xf32, #tpu.memory_space<vmem>>, vector<1x16x16xf32>
    %174 = vector.shape_cast %173 : vector<1x16x16xf32> to vector<16x16xf32>
    %175 = vector.broadcast %172 : f32 to vector<16x16xf32>
    %176 = arith.mulf %175, %174 : vector<16x16xf32>
    %177 = arith.addf %165, %176 : vector<16x16xf32>
    %c62 = arith.constant 62 : index
    %178 = memref.load %arg2[%c62] : memref<98xf32, #tpu.memory_space<smem>>
    %c1_99 = arith.constant 1 : index
    %c1_100 = arith.constant 1 : index
    %c6_101 = arith.constant 6 : index
    %179 = vector.load %arg4[%c1_99, %c1_100, %c6_101] : memref<2x22x22xf32, #tpu.memory_space<vmem>>, vector<1x16x16xf32>
    %180 = vector.shape_cast %179 : vector<1x16x16xf32> to vector<16x16xf32>
    %181 = vector.broadcast %178 : f32 to vector<16x16xf32>
    %182 = arith.mulf %181, %180 : vector<16x16xf32>
    %183 = arith.addf %171, %182 : vector<16x16xf32>
    %c14 = arith.constant 14 : index
    %184 = memref.load %arg2[%c14] : memref<98xf32, #tpu.memory_space<smem>>
    %c0_102 = arith.constant 0 : index
    %c2_103 = arith.constant 2 : index
    %c0_104 = arith.constant 0 : index
    %185 = vector.load %arg4[%c0_102, %c2_103, %c0_104] : memref<2x22x22xf32, #tpu.memory_space<vmem>>, vector<1x16x16xf32>
    %186 = vector.shape_cast %185 : vector<1x16x16xf32> to vector<16x16xf32>
    %187 = vector.broadcast %184 : f32 to vector<16x16xf32>
    %188 = arith.mulf %187, %186 : vector<16x16xf32>
    %189 = arith.addf %177, %188 : vector<16x16xf32>
    %c63 = arith.constant 63 : index
    %190 = memref.load %arg2[%c63] : memref<98xf32, #tpu.memory_space<smem>>
    %c1_105 = arith.constant 1 : index
    %c2_106 = arith.constant 2 : index
    %c0_107 = arith.constant 0 : index
    %191 = vector.load %arg4[%c1_105, %c2_106, %c0_107] : memref<2x22x22xf32, #tpu.memory_space<vmem>>, vector<1x16x16xf32>
    %192 = vector.shape_cast %191 : vector<1x16x16xf32> to vector<16x16xf32>
    %193 = vector.broadcast %190 : f32 to vector<16x16xf32>
    %194 = arith.mulf %193, %192 : vector<16x16xf32>
    %195 = arith.addf %183, %194 : vector<16x16xf32>
    %c15 = arith.constant 15 : index
    %196 = memref.load %arg2[%c15] : memref<98xf32, #tpu.memory_space<smem>>
    %c0_108 = arith.constant 0 : index
    %c2_109 = arith.constant 2 : index
    %c1_110 = arith.constant 1 : index
    %197 = vector.load %arg4[%c0_108, %c2_109, %c1_110] : memref<2x22x22xf32, #tpu.memory_space<vmem>>, vector<1x16x16xf32>
    %198 = vector.shape_cast %197 : vector<1x16x16xf32> to vector<16x16xf32>
    %199 = vector.broadcast %196 : f32 to vector<16x16xf32>
    %200 = arith.mulf %199, %198 : vector<16x16xf32>
    %201 = arith.addf %189, %200 : vector<16x16xf32>
    %c64 = arith.constant 64 : index
    %202 = memref.load %arg2[%c64] : memref<98xf32, #tpu.memory_space<smem>>
    %c1_111 = arith.constant 1 : index
    %c2_112 = arith.constant 2 : index
    %c1_113 = arith.constant 1 : index
    %203 = vector.load %arg4[%c1_111, %c2_112, %c1_113] : memref<2x22x22xf32, #tpu.memory_space<vmem>>, vector<1x16x16xf32>
    %204 = vector.shape_cast %203 : vector<1x16x16xf32> to vector<16x16xf32>
    %205 = vector.broadcast %202 : f32 to vector<16x16xf32>
    %206 = arith.mulf %205, %204 : vector<16x16xf32>
    %207 = arith.addf %195, %206 : vector<16x16xf32>
    %c16 = arith.constant 16 : index
    %208 = memref.load %arg2[%c16] : memref<98xf32, #tpu.memory_space<smem>>
    %c0_114 = arith.constant 0 : index
    %c2_115 = arith.constant 2 : index
    %c2_116 = arith.constant 2 : index
    %209 = vector.load %arg4[%c0_114, %c2_115, %c2_116] : memref<2x22x22xf32, #tpu.memory_space<vmem>>, vector<1x16x16xf32>
    %210 = vector.shape_cast %209 : vector<1x16x16xf32> to vector<16x16xf32>
    %211 = vector.broadcast %208 : f32 to vector<16x16xf32>
    %212 = arith.mulf %211, %210 : vector<16x16xf32>
    %213 = arith.addf %201, %212 : vector<16x16xf32>
    %c65 = arith.constant 65 : index
    %214 = memref.load %arg2[%c65] : memref<98xf32, #tpu.memory_space<smem>>
    %c1_117 = arith.constant 1 : index
    %c2_118 = arith.constant 2 : index
    %c2_119 = arith.constant 2 : index
    %215 = vector.load %arg4[%c1_117, %c2_118, %c2_119] : memref<2x22x22xf32, #tpu.memory_space<vmem>>, vector<1x16x16xf32>
    %216 = vector.shape_cast %215 : vector<1x16x16xf32> to vector<16x16xf32>
    %217 = vector.broadcast %214 : f32 to vector<16x16xf32>
    %218 = arith.mulf %217, %216 : vector<16x16xf32>
    %219 = arith.addf %207, %218 : vector<16x16xf32>
    %c17 = arith.constant 17 : index
    %220 = memref.load %arg2[%c17] : memref<98xf32, #tpu.memory_space<smem>>
    %c0_120 = arith.constant 0 : index
    %c2_121 = arith.constant 2 : index
    %c3_122 = arith.constant 3 : index
    %221 = vector.load %arg4[%c0_120, %c2_121, %c3_122] : memref<2x22x22xf32, #tpu.memory_space<vmem>>, vector<1x16x16xf32>
    %222 = vector.shape_cast %221 : vector<1x16x16xf32> to vector<16x16xf32>
    %223 = vector.broadcast %220 : f32 to vector<16x16xf32>
    %224 = arith.mulf %223, %222 : vector<16x16xf32>
    %225 = arith.addf %213, %224 : vector<16x16xf32>
    %c66 = arith.constant 66 : index
    %226 = memref.load %arg2[%c66] : memref<98xf32, #tpu.memory_space<smem>>
    %c1_123 = arith.constant 1 : index
    %c2_124 = arith.constant 2 : index
    %c3_125 = arith.constant 3 : index
    %227 = vector.load %arg4[%c1_123, %c2_124, %c3_125] : memref<2x22x22xf32, #tpu.memory_space<vmem>>, vector<1x16x16xf32>
    %228 = vector.shape_cast %227 : vector<1x16x16xf32> to vector<16x16xf32>
    %229 = vector.broadcast %226 : f32 to vector<16x16xf32>
    %230 = arith.mulf %229, %228 : vector<16x16xf32>
    %231 = arith.addf %219, %230 : vector<16x16xf32>
    %c18 = arith.constant 18 : index
    %232 = memref.load %arg2[%c18] : memref<98xf32, #tpu.memory_space<smem>>
    %c0_126 = arith.constant 0 : index
    %c2_127 = arith.constant 2 : index
    %c4_128 = arith.constant 4 : index
    %233 = vector.load %arg4[%c0_126, %c2_127, %c4_128] : memref<2x22x22xf32, #tpu.memory_space<vmem>>, vector<1x16x16xf32>
    %234 = vector.shape_cast %233 : vector<1x16x16xf32> to vector<16x16xf32>
    %235 = vector.broadcast %232 : f32 to vector<16x16xf32>
    %236 = arith.mulf %235, %234 : vector<16x16xf32>
    %237 = arith.addf %225, %236 : vector<16x16xf32>
    %c67 = arith.constant 67 : index
    %238 = memref.load %arg2[%c67] : memref<98xf32, #tpu.memory_space<smem>>
    %c1_129 = arith.constant 1 : index
    %c2_130 = arith.constant 2 : index
    %c4_131 = arith.constant 4 : index
    %239 = vector.load %arg4[%c1_129, %c2_130, %c4_131] : memref<2x22x22xf32, #tpu.memory_space<vmem>>, vector<1x16x16xf32>
    %240 = vector.shape_cast %239 : vector<1x16x16xf32> to vector<16x16xf32>
    %241 = vector.broadcast %238 : f32 to vector<16x16xf32>
    %242 = arith.mulf %241, %240 : vector<16x16xf32>
    %243 = arith.addf %231, %242 : vector<16x16xf32>
    %c19 = arith.constant 19 : index
    %244 = memref.load %arg2[%c19] : memref<98xf32, #tpu.memory_space<smem>>
    %c0_132 = arith.constant 0 : index
    %c2_133 = arith.constant 2 : index
    %c5_134 = arith.constant 5 : index
    %245 = vector.load %arg4[%c0_132, %c2_133, %c5_134] : memref<2x22x22xf32, #tpu.memory_space<vmem>>, vector<1x16x16xf32>
    %246 = vector.shape_cast %245 : vector<1x16x16xf32> to vector<16x16xf32>
    %247 = vector.broadcast %244 : f32 to vector<16x16xf32>
    %248 = arith.mulf %247, %246 : vector<16x16xf32>
    %249 = arith.addf %237, %248 : vector<16x16xf32>
    %c68 = arith.constant 68 : index
    %250 = memref.load %arg2[%c68] : memref<98xf32, #tpu.memory_space<smem>>
    %c1_135 = arith.constant 1 : index
    %c2_136 = arith.constant 2 : index
    %c5_137 = arith.constant 5 : index
    %251 = vector.load %arg4[%c1_135, %c2_136, %c5_137] : memref<2x22x22xf32, #tpu.memory_space<vmem>>, vector<1x16x16xf32>
    %252 = vector.shape_cast %251 : vector<1x16x16xf32> to vector<16x16xf32>
    %253 = vector.broadcast %250 : f32 to vector<16x16xf32>
    %254 = arith.mulf %253, %252 : vector<16x16xf32>
    %255 = arith.addf %243, %254 : vector<16x16xf32>
    %c20 = arith.constant 20 : index
    %256 = memref.load %arg2[%c20] : memref<98xf32, #tpu.memory_space<smem>>
    %c0_138 = arith.constant 0 : index
    %c2_139 = arith.constant 2 : index
    %c6_140 = arith.constant 6 : index
    %257 = vector.load %arg4[%c0_138, %c2_139, %c6_140] : memref<2x22x22xf32, #tpu.memory_space<vmem>>, vector<1x16x16xf32>
    %258 = vector.shape_cast %257 : vector<1x16x16xf32> to vector<16x16xf32>
    %259 = vector.broadcast %256 : f32 to vector<16x16xf32>
    %260 = arith.mulf %259, %258 : vector<16x16xf32>
    %261 = arith.addf %249, %260 : vector<16x16xf32>
    %c69 = arith.constant 69 : index
    %262 = memref.load %arg2[%c69] : memref<98xf32, #tpu.memory_space<smem>>
    %c1_141 = arith.constant 1 : index
    %c2_142 = arith.constant 2 : index
    %c6_143 = arith.constant 6 : index
    %263 = vector.load %arg4[%c1_141, %c2_142, %c6_143] : memref<2x22x22xf32, #tpu.memory_space<vmem>>, vector<1x16x16xf32>
    %264 = vector.shape_cast %263 : vector<1x16x16xf32> to vector<16x16xf32>
    %265 = vector.broadcast %262 : f32 to vector<16x16xf32>
    %266 = arith.mulf %265, %264 : vector<16x16xf32>
    %267 = arith.addf %255, %266 : vector<16x16xf32>
    %c21 = arith.constant 21 : index
    %268 = memref.load %arg2[%c21] : memref<98xf32, #tpu.memory_space<smem>>
    %c0_144 = arith.constant 0 : index
    %c3_145 = arith.constant 3 : index
    %c0_146 = arith.constant 0 : index
    %269 = vector.load %arg4[%c0_144, %c3_145, %c0_146] : memref<2x22x22xf32, #tpu.memory_space<vmem>>, vector<1x16x16xf32>
    %270 = vector.shape_cast %269 : vector<1x16x16xf32> to vector<16x16xf32>
    %271 = vector.broadcast %268 : f32 to vector<16x16xf32>
    %272 = arith.mulf %271, %270 : vector<16x16xf32>
    %273 = arith.addf %261, %272 : vector<16x16xf32>
    %c70 = arith.constant 70 : index
    %274 = memref.load %arg2[%c70] : memref<98xf32, #tpu.memory_space<smem>>
    %c1_147 = arith.constant 1 : index
    %c3_148 = arith.constant 3 : index
    %c0_149 = arith.constant 0 : index
    %275 = vector.load %arg4[%c1_147, %c3_148, %c0_149] : memref<2x22x22xf32, #tpu.memory_space<vmem>>, vector<1x16x16xf32>
    %276 = vector.shape_cast %275 : vector<1x16x16xf32> to vector<16x16xf32>
    %277 = vector.broadcast %274 : f32 to vector<16x16xf32>
    %278 = arith.mulf %277, %276 : vector<16x16xf32>
    %279 = arith.addf %267, %278 : vector<16x16xf32>
    %c22 = arith.constant 22 : index
    %280 = memref.load %arg2[%c22] : memref<98xf32, #tpu.memory_space<smem>>
    %c0_150 = arith.constant 0 : index
    %c3_151 = arith.constant 3 : index
    %c1_152 = arith.constant 1 : index
    %281 = vector.load %arg4[%c0_150, %c3_151, %c1_152] : memref<2x22x22xf32, #tpu.memory_space<vmem>>, vector<1x16x16xf32>
    %282 = vector.shape_cast %281 : vector<1x16x16xf32> to vector<16x16xf32>
    %283 = vector.broadcast %280 : f32 to vector<16x16xf32>
    %284 = arith.mulf %283, %282 : vector<16x16xf32>
    %285 = arith.addf %273, %284 : vector<16x16xf32>
    %c71 = arith.constant 71 : index
    %286 = memref.load %arg2[%c71] : memref<98xf32, #tpu.memory_space<smem>>
    %c1_153 = arith.constant 1 : index
    %c3_154 = arith.constant 3 : index
    %c1_155 = arith.constant 1 : index
    %287 = vector.load %arg4[%c1_153, %c3_154, %c1_155] : memref<2x22x22xf32, #tpu.memory_space<vmem>>, vector<1x16x16xf32>
    %288 = vector.shape_cast %287 : vector<1x16x16xf32> to vector<16x16xf32>
    %289 = vector.broadcast %286 : f32 to vector<16x16xf32>
    %290 = arith.mulf %289, %288 : vector<16x16xf32>
    %291 = arith.addf %279, %290 : vector<16x16xf32>
    %c23 = arith.constant 23 : index
    %292 = memref.load %arg2[%c23] : memref<98xf32, #tpu.memory_space<smem>>
    %c0_156 = arith.constant 0 : index
    %c3_157 = arith.constant 3 : index
    %c2_158 = arith.constant 2 : index
    %293 = vector.load %arg4[%c0_156, %c3_157, %c2_158] : memref<2x22x22xf32, #tpu.memory_space<vmem>>, vector<1x16x16xf32>
    %294 = vector.shape_cast %293 : vector<1x16x16xf32> to vector<16x16xf32>
    %295 = vector.broadcast %292 : f32 to vector<16x16xf32>
    %296 = arith.mulf %295, %294 : vector<16x16xf32>
    %297 = arith.addf %285, %296 : vector<16x16xf32>
    %c72 = arith.constant 72 : index
    %298 = memref.load %arg2[%c72] : memref<98xf32, #tpu.memory_space<smem>>
    %c1_159 = arith.constant 1 : index
    %c3_160 = arith.constant 3 : index
    %c2_161 = arith.constant 2 : index
    %299 = vector.load %arg4[%c1_159, %c3_160, %c2_161] : memref<2x22x22xf32, #tpu.memory_space<vmem>>, vector<1x16x16xf32>
    %300 = vector.shape_cast %299 : vector<1x16x16xf32> to vector<16x16xf32>
    %301 = vector.broadcast %298 : f32 to vector<16x16xf32>
    %302 = arith.mulf %301, %300 : vector<16x16xf32>
    %303 = arith.addf %291, %302 : vector<16x16xf32>
    %c24 = arith.constant 24 : index
    %304 = memref.load %arg2[%c24] : memref<98xf32, #tpu.memory_space<smem>>
    %c0_162 = arith.constant 0 : index
    %c3_163 = arith.constant 3 : index
    %c3_164 = arith.constant 3 : index
    %305 = vector.load %arg4[%c0_162, %c3_163, %c3_164] : memref<2x22x22xf32, #tpu.memory_space<vmem>>, vector<1x16x16xf32>
    %306 = vector.shape_cast %305 : vector<1x16x16xf32> to vector<16x16xf32>
    %307 = vector.broadcast %304 : f32 to vector<16x16xf32>
    %308 = arith.mulf %307, %306 : vector<16x16xf32>
    %309 = arith.addf %297, %308 : vector<16x16xf32>
    %c73 = arith.constant 73 : index
    %310 = memref.load %arg2[%c73] : memref<98xf32, #tpu.memory_space<smem>>
    %c1_165 = arith.constant 1 : index
    %c3_166 = arith.constant 3 : index
    %c3_167 = arith.constant 3 : index
    %311 = vector.load %arg4[%c1_165, %c3_166, %c3_167] : memref<2x22x22xf32, #tpu.memory_space<vmem>>, vector<1x16x16xf32>
    %312 = vector.shape_cast %311 : vector<1x16x16xf32> to vector<16x16xf32>
    %313 = vector.broadcast %310 : f32 to vector<16x16xf32>
    %314 = arith.mulf %313, %312 : vector<16x16xf32>
    %315 = arith.addf %303, %314 : vector<16x16xf32>
    %c25 = arith.constant 25 : index
    %316 = memref.load %arg2[%c25] : memref<98xf32, #tpu.memory_space<smem>>
    %c0_168 = arith.constant 0 : index
    %c3_169 = arith.constant 3 : index
    %c4_170 = arith.constant 4 : index
    %317 = vector.load %arg4[%c0_168, %c3_169, %c4_170] : memref<2x22x22xf32, #tpu.memory_space<vmem>>, vector<1x16x16xf32>
    %318 = vector.shape_cast %317 : vector<1x16x16xf32> to vector<16x16xf32>
    %319 = vector.broadcast %316 : f32 to vector<16x16xf32>
    %320 = arith.mulf %319, %318 : vector<16x16xf32>
    %321 = arith.addf %309, %320 : vector<16x16xf32>
    %c74 = arith.constant 74 : index
    %322 = memref.load %arg2[%c74] : memref<98xf32, #tpu.memory_space<smem>>
    %c1_171 = arith.constant 1 : index
    %c3_172 = arith.constant 3 : index
    %c4_173 = arith.constant 4 : index
    %323 = vector.load %arg4[%c1_171, %c3_172, %c4_173] : memref<2x22x22xf32, #tpu.memory_space<vmem>>, vector<1x16x16xf32>
    %324 = vector.shape_cast %323 : vector<1x16x16xf32> to vector<16x16xf32>
    %325 = vector.broadcast %322 : f32 to vector<16x16xf32>
    %326 = arith.mulf %325, %324 : vector<16x16xf32>
    %327 = arith.addf %315, %326 : vector<16x16xf32>
    %c26 = arith.constant 26 : index
    %328 = memref.load %arg2[%c26] : memref<98xf32, #tpu.memory_space<smem>>
    %c0_174 = arith.constant 0 : index
    %c3_175 = arith.constant 3 : index
    %c5_176 = arith.constant 5 : index
    %329 = vector.load %arg4[%c0_174, %c3_175, %c5_176] : memref<2x22x22xf32, #tpu.memory_space<vmem>>, vector<1x16x16xf32>
    %330 = vector.shape_cast %329 : vector<1x16x16xf32> to vector<16x16xf32>
    %331 = vector.broadcast %328 : f32 to vector<16x16xf32>
    %332 = arith.mulf %331, %330 : vector<16x16xf32>
    %333 = arith.addf %321, %332 : vector<16x16xf32>
    %c75 = arith.constant 75 : index
    %334 = memref.load %arg2[%c75] : memref<98xf32, #tpu.memory_space<smem>>
    %c1_177 = arith.constant 1 : index
    %c3_178 = arith.constant 3 : index
    %c5_179 = arith.constant 5 : index
    %335 = vector.load %arg4[%c1_177, %c3_178, %c5_179] : memref<2x22x22xf32, #tpu.memory_space<vmem>>, vector<1x16x16xf32>
    %336 = vector.shape_cast %335 : vector<1x16x16xf32> to vector<16x16xf32>
    %337 = vector.broadcast %334 : f32 to vector<16x16xf32>
    %338 = arith.mulf %337, %336 : vector<16x16xf32>
    %339 = arith.addf %327, %338 : vector<16x16xf32>
    %c27 = arith.constant 27 : index
    %340 = memref.load %arg2[%c27] : memref<98xf32, #tpu.memory_space<smem>>
    %c0_180 = arith.constant 0 : index
    %c3_181 = arith.constant 3 : index
    %c6_182 = arith.constant 6 : index
    %341 = vector.load %arg4[%c0_180, %c3_181, %c6_182] : memref<2x22x22xf32, #tpu.memory_space<vmem>>, vector<1x16x16xf32>
    %342 = vector.shape_cast %341 : vector<1x16x16xf32> to vector<16x16xf32>
    %343 = vector.broadcast %340 : f32 to vector<16x16xf32>
    %344 = arith.mulf %343, %342 : vector<16x16xf32>
    %345 = arith.addf %333, %344 : vector<16x16xf32>
    %c76 = arith.constant 76 : index
    %346 = memref.load %arg2[%c76] : memref<98xf32, #tpu.memory_space<smem>>
    %c1_183 = arith.constant 1 : index
    %c3_184 = arith.constant 3 : index
    %c6_185 = arith.constant 6 : index
    %347 = vector.load %arg4[%c1_183, %c3_184, %c6_185] : memref<2x22x22xf32, #tpu.memory_space<vmem>>, vector<1x16x16xf32>
    %348 = vector.shape_cast %347 : vector<1x16x16xf32> to vector<16x16xf32>
    %349 = vector.broadcast %346 : f32 to vector<16x16xf32>
    %350 = arith.mulf %349, %348 : vector<16x16xf32>
    %351 = arith.addf %339, %350 : vector<16x16xf32>
    %c28 = arith.constant 28 : index
    %352 = memref.load %arg2[%c28] : memref<98xf32, #tpu.memory_space<smem>>
    %c0_186 = arith.constant 0 : index
    %c4_187 = arith.constant 4 : index
    %c0_188 = arith.constant 0 : index
    %353 = vector.load %arg4[%c0_186, %c4_187, %c0_188] : memref<2x22x22xf32, #tpu.memory_space<vmem>>, vector<1x16x16xf32>
    %354 = vector.shape_cast %353 : vector<1x16x16xf32> to vector<16x16xf32>
    %355 = vector.broadcast %352 : f32 to vector<16x16xf32>
    %356 = arith.mulf %355, %354 : vector<16x16xf32>
    %357 = arith.addf %345, %356 : vector<16x16xf32>
    %c77 = arith.constant 77 : index
    %358 = memref.load %arg2[%c77] : memref<98xf32, #tpu.memory_space<smem>>
    %c1_189 = arith.constant 1 : index
    %c4_190 = arith.constant 4 : index
    %c0_191 = arith.constant 0 : index
    %359 = vector.load %arg4[%c1_189, %c4_190, %c0_191] : memref<2x22x22xf32, #tpu.memory_space<vmem>>, vector<1x16x16xf32>
    %360 = vector.shape_cast %359 : vector<1x16x16xf32> to vector<16x16xf32>
    %361 = vector.broadcast %358 : f32 to vector<16x16xf32>
    %362 = arith.mulf %361, %360 : vector<16x16xf32>
    %363 = arith.addf %351, %362 : vector<16x16xf32>
    %c29 = arith.constant 29 : index
    %364 = memref.load %arg2[%c29] : memref<98xf32, #tpu.memory_space<smem>>
    %c0_192 = arith.constant 0 : index
    %c4_193 = arith.constant 4 : index
    %c1_194 = arith.constant 1 : index
    %365 = vector.load %arg4[%c0_192, %c4_193, %c1_194] : memref<2x22x22xf32, #tpu.memory_space<vmem>>, vector<1x16x16xf32>
    %366 = vector.shape_cast %365 : vector<1x16x16xf32> to vector<16x16xf32>
    %367 = vector.broadcast %364 : f32 to vector<16x16xf32>
    %368 = arith.mulf %367, %366 : vector<16x16xf32>
    %369 = arith.addf %357, %368 : vector<16x16xf32>
    %c78 = arith.constant 78 : index
    %370 = memref.load %arg2[%c78] : memref<98xf32, #tpu.memory_space<smem>>
    %c1_195 = arith.constant 1 : index
    %c4_196 = arith.constant 4 : index
    %c1_197 = arith.constant 1 : index
    %371 = vector.load %arg4[%c1_195, %c4_196, %c1_197] : memref<2x22x22xf32, #tpu.memory_space<vmem>>, vector<1x16x16xf32>
    %372 = vector.shape_cast %371 : vector<1x16x16xf32> to vector<16x16xf32>
    %373 = vector.broadcast %370 : f32 to vector<16x16xf32>
    %374 = arith.mulf %373, %372 : vector<16x16xf32>
    %375 = arith.addf %363, %374 : vector<16x16xf32>
    %c30 = arith.constant 30 : index
    %376 = memref.load %arg2[%c30] : memref<98xf32, #tpu.memory_space<smem>>
    %c0_198 = arith.constant 0 : index
    %c4_199 = arith.constant 4 : index
    %c2_200 = arith.constant 2 : index
    %377 = vector.load %arg4[%c0_198, %c4_199, %c2_200] : memref<2x22x22xf32, #tpu.memory_space<vmem>>, vector<1x16x16xf32>
    %378 = vector.shape_cast %377 : vector<1x16x16xf32> to vector<16x16xf32>
    %379 = vector.broadcast %376 : f32 to vector<16x16xf32>
    %380 = arith.mulf %379, %378 : vector<16x16xf32>
    %381 = arith.addf %369, %380 : vector<16x16xf32>
    %c79 = arith.constant 79 : index
    %382 = memref.load %arg2[%c79] : memref<98xf32, #tpu.memory_space<smem>>
    %c1_201 = arith.constant 1 : index
    %c4_202 = arith.constant 4 : index
    %c2_203 = arith.constant 2 : index
    %383 = vector.load %arg4[%c1_201, %c4_202, %c2_203] : memref<2x22x22xf32, #tpu.memory_space<vmem>>, vector<1x16x16xf32>
    %384 = vector.shape_cast %383 : vector<1x16x16xf32> to vector<16x16xf32>
    %385 = vector.broadcast %382 : f32 to vector<16x16xf32>
    %386 = arith.mulf %385, %384 : vector<16x16xf32>
    %387 = arith.addf %375, %386 : vector<16x16xf32>
    %c31 = arith.constant 31 : index
    %388 = memref.load %arg2[%c31] : memref<98xf32, #tpu.memory_space<smem>>
    %c0_204 = arith.constant 0 : index
    %c4_205 = arith.constant 4 : index
    %c3_206 = arith.constant 3 : index
    %389 = vector.load %arg4[%c0_204, %c4_205, %c3_206] : memref<2x22x22xf32, #tpu.memory_space<vmem>>, vector<1x16x16xf32>
    %390 = vector.shape_cast %389 : vector<1x16x16xf32> to vector<16x16xf32>
    %391 = vector.broadcast %388 : f32 to vector<16x16xf32>
    %392 = arith.mulf %391, %390 : vector<16x16xf32>
    %393 = arith.addf %381, %392 : vector<16x16xf32>
    %c80 = arith.constant 80 : index
    %394 = memref.load %arg2[%c80] : memref<98xf32, #tpu.memory_space<smem>>
    %c1_207 = arith.constant 1 : index
    %c4_208 = arith.constant 4 : index
    %c3_209 = arith.constant 3 : index
    %395 = vector.load %arg4[%c1_207, %c4_208, %c3_209] : memref<2x22x22xf32, #tpu.memory_space<vmem>>, vector<1x16x16xf32>
    %396 = vector.shape_cast %395 : vector<1x16x16xf32> to vector<16x16xf32>
    %397 = vector.broadcast %394 : f32 to vector<16x16xf32>
    %398 = arith.mulf %397, %396 : vector<16x16xf32>
    %399 = arith.addf %387, %398 : vector<16x16xf32>
    %c32 = arith.constant 32 : index
    %400 = memref.load %arg2[%c32] : memref<98xf32, #tpu.memory_space<smem>>
    %c0_210 = arith.constant 0 : index
    %c4_211 = arith.constant 4 : index
    %c4_212 = arith.constant 4 : index
    %401 = vector.load %arg4[%c0_210, %c4_211, %c4_212] : memref<2x22x22xf32, #tpu.memory_space<vmem>>, vector<1x16x16xf32>
    %402 = vector.shape_cast %401 : vector<1x16x16xf32> to vector<16x16xf32>
    %403 = vector.broadcast %400 : f32 to vector<16x16xf32>
    %404 = arith.mulf %403, %402 : vector<16x16xf32>
    %405 = arith.addf %393, %404 : vector<16x16xf32>
    %c81 = arith.constant 81 : index
    %406 = memref.load %arg2[%c81] : memref<98xf32, #tpu.memory_space<smem>>
    %c1_213 = arith.constant 1 : index
    %c4_214 = arith.constant 4 : index
    %c4_215 = arith.constant 4 : index
    %407 = vector.load %arg4[%c1_213, %c4_214, %c4_215] : memref<2x22x22xf32, #tpu.memory_space<vmem>>, vector<1x16x16xf32>
    %408 = vector.shape_cast %407 : vector<1x16x16xf32> to vector<16x16xf32>
    %409 = vector.broadcast %406 : f32 to vector<16x16xf32>
    %410 = arith.mulf %409, %408 : vector<16x16xf32>
    %411 = arith.addf %399, %410 : vector<16x16xf32>
    %c33 = arith.constant 33 : index
    %412 = memref.load %arg2[%c33] : memref<98xf32, #tpu.memory_space<smem>>
    %c0_216 = arith.constant 0 : index
    %c4_217 = arith.constant 4 : index
    %c5_218 = arith.constant 5 : index
    %413 = vector.load %arg4[%c0_216, %c4_217, %c5_218] : memref<2x22x22xf32, #tpu.memory_space<vmem>>, vector<1x16x16xf32>
    %414 = vector.shape_cast %413 : vector<1x16x16xf32> to vector<16x16xf32>
    %415 = vector.broadcast %412 : f32 to vector<16x16xf32>
    %416 = arith.mulf %415, %414 : vector<16x16xf32>
    %417 = arith.addf %405, %416 : vector<16x16xf32>
    %c82 = arith.constant 82 : index
    %418 = memref.load %arg2[%c82] : memref<98xf32, #tpu.memory_space<smem>>
    %c1_219 = arith.constant 1 : index
    %c4_220 = arith.constant 4 : index
    %c5_221 = arith.constant 5 : index
    %419 = vector.load %arg4[%c1_219, %c4_220, %c5_221] : memref<2x22x22xf32, #tpu.memory_space<vmem>>, vector<1x16x16xf32>
    %420 = vector.shape_cast %419 : vector<1x16x16xf32> to vector<16x16xf32>
    %421 = vector.broadcast %418 : f32 to vector<16x16xf32>
    %422 = arith.mulf %421, %420 : vector<16x16xf32>
    %423 = arith.addf %411, %422 : vector<16x16xf32>
    %c34 = arith.constant 34 : index
    %424 = memref.load %arg2[%c34] : memref<98xf32, #tpu.memory_space<smem>>
    %c0_222 = arith.constant 0 : index
    %c4_223 = arith.constant 4 : index
    %c6_224 = arith.constant 6 : index
    %425 = vector.load %arg4[%c0_222, %c4_223, %c6_224] : memref<2x22x22xf32, #tpu.memory_space<vmem>>, vector<1x16x16xf32>
    %426 = vector.shape_cast %425 : vector<1x16x16xf32> to vector<16x16xf32>
    %427 = vector.broadcast %424 : f32 to vector<16x16xf32>
    %428 = arith.mulf %427, %426 : vector<16x16xf32>
    %429 = arith.addf %417, %428 : vector<16x16xf32>
    %c83 = arith.constant 83 : index
    %430 = memref.load %arg2[%c83] : memref<98xf32, #tpu.memory_space<smem>>
    %c1_225 = arith.constant 1 : index
    %c4_226 = arith.constant 4 : index
    %c6_227 = arith.constant 6 : index
    %431 = vector.load %arg4[%c1_225, %c4_226, %c6_227] : memref<2x22x22xf32, #tpu.memory_space<vmem>>, vector<1x16x16xf32>
    %432 = vector.shape_cast %431 : vector<1x16x16xf32> to vector<16x16xf32>
    %433 = vector.broadcast %430 : f32 to vector<16x16xf32>
    %434 = arith.mulf %433, %432 : vector<16x16xf32>
    %435 = arith.addf %423, %434 : vector<16x16xf32>
    %c35 = arith.constant 35 : index
    %436 = memref.load %arg2[%c35] : memref<98xf32, #tpu.memory_space<smem>>
    %c0_228 = arith.constant 0 : index
    %c5_229 = arith.constant 5 : index
    %c0_230 = arith.constant 0 : index
    %437 = vector.load %arg4[%c0_228, %c5_229, %c0_230] : memref<2x22x22xf32, #tpu.memory_space<vmem>>, vector<1x16x16xf32>
    %438 = vector.shape_cast %437 : vector<1x16x16xf32> to vector<16x16xf32>
    %439 = vector.broadcast %436 : f32 to vector<16x16xf32>
    %440 = arith.mulf %439, %438 : vector<16x16xf32>
    %441 = arith.addf %429, %440 : vector<16x16xf32>
    %c84 = arith.constant 84 : index
    %442 = memref.load %arg2[%c84] : memref<98xf32, #tpu.memory_space<smem>>
    %c1_231 = arith.constant 1 : index
    %c5_232 = arith.constant 5 : index
    %c0_233 = arith.constant 0 : index
    %443 = vector.load %arg4[%c1_231, %c5_232, %c0_233] : memref<2x22x22xf32, #tpu.memory_space<vmem>>, vector<1x16x16xf32>
    %444 = vector.shape_cast %443 : vector<1x16x16xf32> to vector<16x16xf32>
    %445 = vector.broadcast %442 : f32 to vector<16x16xf32>
    %446 = arith.mulf %445, %444 : vector<16x16xf32>
    %447 = arith.addf %435, %446 : vector<16x16xf32>
    %c36 = arith.constant 36 : index
    %448 = memref.load %arg2[%c36] : memref<98xf32, #tpu.memory_space<smem>>
    %c0_234 = arith.constant 0 : index
    %c5_235 = arith.constant 5 : index
    %c1_236 = arith.constant 1 : index
    %449 = vector.load %arg4[%c0_234, %c5_235, %c1_236] : memref<2x22x22xf32, #tpu.memory_space<vmem>>, vector<1x16x16xf32>
    %450 = vector.shape_cast %449 : vector<1x16x16xf32> to vector<16x16xf32>
    %451 = vector.broadcast %448 : f32 to vector<16x16xf32>
    %452 = arith.mulf %451, %450 : vector<16x16xf32>
    %453 = arith.addf %441, %452 : vector<16x16xf32>
    %c85 = arith.constant 85 : index
    %454 = memref.load %arg2[%c85] : memref<98xf32, #tpu.memory_space<smem>>
    %c1_237 = arith.constant 1 : index
    %c5_238 = arith.constant 5 : index
    %c1_239 = arith.constant 1 : index
    %455 = vector.load %arg4[%c1_237, %c5_238, %c1_239] : memref<2x22x22xf32, #tpu.memory_space<vmem>>, vector<1x16x16xf32>
    %456 = vector.shape_cast %455 : vector<1x16x16xf32> to vector<16x16xf32>
    %457 = vector.broadcast %454 : f32 to vector<16x16xf32>
    %458 = arith.mulf %457, %456 : vector<16x16xf32>
    %459 = arith.addf %447, %458 : vector<16x16xf32>
    %c37 = arith.constant 37 : index
    %460 = memref.load %arg2[%c37] : memref<98xf32, #tpu.memory_space<smem>>
    %c0_240 = arith.constant 0 : index
    %c5_241 = arith.constant 5 : index
    %c2_242 = arith.constant 2 : index
    %461 = vector.load %arg4[%c0_240, %c5_241, %c2_242] : memref<2x22x22xf32, #tpu.memory_space<vmem>>, vector<1x16x16xf32>
    %462 = vector.shape_cast %461 : vector<1x16x16xf32> to vector<16x16xf32>
    %463 = vector.broadcast %460 : f32 to vector<16x16xf32>
    %464 = arith.mulf %463, %462 : vector<16x16xf32>
    %465 = arith.addf %453, %464 : vector<16x16xf32>
    %c86 = arith.constant 86 : index
    %466 = memref.load %arg2[%c86] : memref<98xf32, #tpu.memory_space<smem>>
    %c1_243 = arith.constant 1 : index
    %c5_244 = arith.constant 5 : index
    %c2_245 = arith.constant 2 : index
    %467 = vector.load %arg4[%c1_243, %c5_244, %c2_245] : memref<2x22x22xf32, #tpu.memory_space<vmem>>, vector<1x16x16xf32>
    %468 = vector.shape_cast %467 : vector<1x16x16xf32> to vector<16x16xf32>
    %469 = vector.broadcast %466 : f32 to vector<16x16xf32>
    %470 = arith.mulf %469, %468 : vector<16x16xf32>
    %471 = arith.addf %459, %470 : vector<16x16xf32>
    %c38 = arith.constant 38 : index
    %472 = memref.load %arg2[%c38] : memref<98xf32, #tpu.memory_space<smem>>
    %c0_246 = arith.constant 0 : index
    %c5_247 = arith.constant 5 : index
    %c3_248 = arith.constant 3 : index
    %473 = vector.load %arg4[%c0_246, %c5_247, %c3_248] : memref<2x22x22xf32, #tpu.memory_space<vmem>>, vector<1x16x16xf32>
    %474 = vector.shape_cast %473 : vector<1x16x16xf32> to vector<16x16xf32>
    %475 = vector.broadcast %472 : f32 to vector<16x16xf32>
    %476 = arith.mulf %475, %474 : vector<16x16xf32>
    %477 = arith.addf %465, %476 : vector<16x16xf32>
    %c87 = arith.constant 87 : index
    %478 = memref.load %arg2[%c87] : memref<98xf32, #tpu.memory_space<smem>>
    %c1_249 = arith.constant 1 : index
    %c5_250 = arith.constant 5 : index
    %c3_251 = arith.constant 3 : index
    %479 = vector.load %arg4[%c1_249, %c5_250, %c3_251] : memref<2x22x22xf32, #tpu.memory_space<vmem>>, vector<1x16x16xf32>
    %480 = vector.shape_cast %479 : vector<1x16x16xf32> to vector<16x16xf32>
    %481 = vector.broadcast %478 : f32 to vector<16x16xf32>
    %482 = arith.mulf %481, %480 : vector<16x16xf32>
    %483 = arith.addf %471, %482 : vector<16x16xf32>
    %c39 = arith.constant 39 : index
    %484 = memref.load %arg2[%c39] : memref<98xf32, #tpu.memory_space<smem>>
    %c0_252 = arith.constant 0 : index
    %c5_253 = arith.constant 5 : index
    %c4_254 = arith.constant 4 : index
    %485 = vector.load %arg4[%c0_252, %c5_253, %c4_254] : memref<2x22x22xf32, #tpu.memory_space<vmem>>, vector<1x16x16xf32>
    %486 = vector.shape_cast %485 : vector<1x16x16xf32> to vector<16x16xf32>
    %487 = vector.broadcast %484 : f32 to vector<16x16xf32>
    %488 = arith.mulf %487, %486 : vector<16x16xf32>
    %489 = arith.addf %477, %488 : vector<16x16xf32>
    %c88 = arith.constant 88 : index
    %490 = memref.load %arg2[%c88] : memref<98xf32, #tpu.memory_space<smem>>
    %c1_255 = arith.constant 1 : index
    %c5_256 = arith.constant 5 : index
    %c4_257 = arith.constant 4 : index
    %491 = vector.load %arg4[%c1_255, %c5_256, %c4_257] : memref<2x22x22xf32, #tpu.memory_space<vmem>>, vector<1x16x16xf32>
    %492 = vector.shape_cast %491 : vector<1x16x16xf32> to vector<16x16xf32>
    %493 = vector.broadcast %490 : f32 to vector<16x16xf32>
    %494 = arith.mulf %493, %492 : vector<16x16xf32>
    %495 = arith.addf %483, %494 : vector<16x16xf32>
    %c40 = arith.constant 40 : index
    %496 = memref.load %arg2[%c40] : memref<98xf32, #tpu.memory_space<smem>>
    %c0_258 = arith.constant 0 : index
    %c5_259 = arith.constant 5 : index
    %c5_260 = arith.constant 5 : index
    %497 = vector.load %arg4[%c0_258, %c5_259, %c5_260] : memref<2x22x22xf32, #tpu.memory_space<vmem>>, vector<1x16x16xf32>
    %498 = vector.shape_cast %497 : vector<1x16x16xf32> to vector<16x16xf32>
    %499 = vector.broadcast %496 : f32 to vector<16x16xf32>
    %500 = arith.mulf %499, %498 : vector<16x16xf32>
    %501 = arith.addf %489, %500 : vector<16x16xf32>
    %c89 = arith.constant 89 : index
    %502 = memref.load %arg2[%c89] : memref<98xf32, #tpu.memory_space<smem>>
    %c1_261 = arith.constant 1 : index
    %c5_262 = arith.constant 5 : index
    %c5_263 = arith.constant 5 : index
    %503 = vector.load %arg4[%c1_261, %c5_262, %c5_263] : memref<2x22x22xf32, #tpu.memory_space<vmem>>, vector<1x16x16xf32>
    %504 = vector.shape_cast %503 : vector<1x16x16xf32> to vector<16x16xf32>
    %505 = vector.broadcast %502 : f32 to vector<16x16xf32>
    %506 = arith.mulf %505, %504 : vector<16x16xf32>
    %507 = arith.addf %495, %506 : vector<16x16xf32>
    %c41 = arith.constant 41 : index
    %508 = memref.load %arg2[%c41] : memref<98xf32, #tpu.memory_space<smem>>
    %c0_264 = arith.constant 0 : index
    %c5_265 = arith.constant 5 : index
    %c6_266 = arith.constant 6 : index
    %509 = vector.load %arg4[%c0_264, %c5_265, %c6_266] : memref<2x22x22xf32, #tpu.memory_space<vmem>>, vector<1x16x16xf32>
    %510 = vector.shape_cast %509 : vector<1x16x16xf32> to vector<16x16xf32>
    %511 = vector.broadcast %508 : f32 to vector<16x16xf32>
    %512 = arith.mulf %511, %510 : vector<16x16xf32>
    %513 = arith.addf %501, %512 : vector<16x16xf32>
    %c90 = arith.constant 90 : index
    %514 = memref.load %arg2[%c90] : memref<98xf32, #tpu.memory_space<smem>>
    %c1_267 = arith.constant 1 : index
    %c5_268 = arith.constant 5 : index
    %c6_269 = arith.constant 6 : index
    %515 = vector.load %arg4[%c1_267, %c5_268, %c6_269] : memref<2x22x22xf32, #tpu.memory_space<vmem>>, vector<1x16x16xf32>
    %516 = vector.shape_cast %515 : vector<1x16x16xf32> to vector<16x16xf32>
    %517 = vector.broadcast %514 : f32 to vector<16x16xf32>
    %518 = arith.mulf %517, %516 : vector<16x16xf32>
    %519 = arith.addf %507, %518 : vector<16x16xf32>
    %c42 = arith.constant 42 : index
    %520 = memref.load %arg2[%c42] : memref<98xf32, #tpu.memory_space<smem>>
    %c0_270 = arith.constant 0 : index
    %c6_271 = arith.constant 6 : index
    %c0_272 = arith.constant 0 : index
    %521 = vector.load %arg4[%c0_270, %c6_271, %c0_272] : memref<2x22x22xf32, #tpu.memory_space<vmem>>, vector<1x16x16xf32>
    %522 = vector.shape_cast %521 : vector<1x16x16xf32> to vector<16x16xf32>
    %523 = vector.broadcast %520 : f32 to vector<16x16xf32>
    %524 = arith.mulf %523, %522 : vector<16x16xf32>
    %525 = arith.addf %513, %524 : vector<16x16xf32>
    %c91 = arith.constant 91 : index
    %526 = memref.load %arg2[%c91] : memref<98xf32, #tpu.memory_space<smem>>
    %c1_273 = arith.constant 1 : index
    %c6_274 = arith.constant 6 : index
    %c0_275 = arith.constant 0 : index
    %527 = vector.load %arg4[%c1_273, %c6_274, %c0_275] : memref<2x22x22xf32, #tpu.memory_space<vmem>>, vector<1x16x16xf32>
    %528 = vector.shape_cast %527 : vector<1x16x16xf32> to vector<16x16xf32>
    %529 = vector.broadcast %526 : f32 to vector<16x16xf32>
    %530 = arith.mulf %529, %528 : vector<16x16xf32>
    %531 = arith.addf %519, %530 : vector<16x16xf32>
    %c43 = arith.constant 43 : index
    %532 = memref.load %arg2[%c43] : memref<98xf32, #tpu.memory_space<smem>>
    %c0_276 = arith.constant 0 : index
    %c6_277 = arith.constant 6 : index
    %c1_278 = arith.constant 1 : index
    %533 = vector.load %arg4[%c0_276, %c6_277, %c1_278] : memref<2x22x22xf32, #tpu.memory_space<vmem>>, vector<1x16x16xf32>
    %534 = vector.shape_cast %533 : vector<1x16x16xf32> to vector<16x16xf32>
    %535 = vector.broadcast %532 : f32 to vector<16x16xf32>
    %536 = arith.mulf %535, %534 : vector<16x16xf32>
    %537 = arith.addf %525, %536 : vector<16x16xf32>
    %c92 = arith.constant 92 : index
    %538 = memref.load %arg2[%c92] : memref<98xf32, #tpu.memory_space<smem>>
    %c1_279 = arith.constant 1 : index
    %c6_280 = arith.constant 6 : index
    %c1_281 = arith.constant 1 : index
    %539 = vector.load %arg4[%c1_279, %c6_280, %c1_281] : memref<2x22x22xf32, #tpu.memory_space<vmem>>, vector<1x16x16xf32>
    %540 = vector.shape_cast %539 : vector<1x16x16xf32> to vector<16x16xf32>
    %541 = vector.broadcast %538 : f32 to vector<16x16xf32>
    %542 = arith.mulf %541, %540 : vector<16x16xf32>
    %543 = arith.addf %531, %542 : vector<16x16xf32>
    %c44 = arith.constant 44 : index
    %544 = memref.load %arg2[%c44] : memref<98xf32, #tpu.memory_space<smem>>
    %c0_282 = arith.constant 0 : index
    %c6_283 = arith.constant 6 : index
    %c2_284 = arith.constant 2 : index
    %545 = vector.load %arg4[%c0_282, %c6_283, %c2_284] : memref<2x22x22xf32, #tpu.memory_space<vmem>>, vector<1x16x16xf32>
    %546 = vector.shape_cast %545 : vector<1x16x16xf32> to vector<16x16xf32>
    %547 = vector.broadcast %544 : f32 to vector<16x16xf32>
    %548 = arith.mulf %547, %546 : vector<16x16xf32>
    %549 = arith.addf %537, %548 : vector<16x16xf32>
    %c93 = arith.constant 93 : index
    %550 = memref.load %arg2[%c93] : memref<98xf32, #tpu.memory_space<smem>>
    %c1_285 = arith.constant 1 : index
    %c6_286 = arith.constant 6 : index
    %c2_287 = arith.constant 2 : index
    %551 = vector.load %arg4[%c1_285, %c6_286, %c2_287] : memref<2x22x22xf32, #tpu.memory_space<vmem>>, vector<1x16x16xf32>
    %552 = vector.shape_cast %551 : vector<1x16x16xf32> to vector<16x16xf32>
    %553 = vector.broadcast %550 : f32 to vector<16x16xf32>
    %554 = arith.mulf %553, %552 : vector<16x16xf32>
    %555 = arith.addf %543, %554 : vector<16x16xf32>
    %c45 = arith.constant 45 : index
    %556 = memref.load %arg2[%c45] : memref<98xf32, #tpu.memory_space<smem>>
    %c0_288 = arith.constant 0 : index
    %c6_289 = arith.constant 6 : index
    %c3_290 = arith.constant 3 : index
    %557 = vector.load %arg4[%c0_288, %c6_289, %c3_290] : memref<2x22x22xf32, #tpu.memory_space<vmem>>, vector<1x16x16xf32>
    %558 = vector.shape_cast %557 : vector<1x16x16xf32> to vector<16x16xf32>
    %559 = vector.broadcast %556 : f32 to vector<16x16xf32>
    %560 = arith.mulf %559, %558 : vector<16x16xf32>
    %561 = arith.addf %549, %560 : vector<16x16xf32>
    %c94 = arith.constant 94 : index
    %562 = memref.load %arg2[%c94] : memref<98xf32, #tpu.memory_space<smem>>
    %c1_291 = arith.constant 1 : index
    %c6_292 = arith.constant 6 : index
    %c3_293 = arith.constant 3 : index
    %563 = vector.load %arg4[%c1_291, %c6_292, %c3_293] : memref<2x22x22xf32, #tpu.memory_space<vmem>>, vector<1x16x16xf32>
    %564 = vector.shape_cast %563 : vector<1x16x16xf32> to vector<16x16xf32>
    %565 = vector.broadcast %562 : f32 to vector<16x16xf32>
    %566 = arith.mulf %565, %564 : vector<16x16xf32>
    %567 = arith.addf %555, %566 : vector<16x16xf32>
    %c46 = arith.constant 46 : index
    %568 = memref.load %arg2[%c46] : memref<98xf32, #tpu.memory_space<smem>>
    %c0_294 = arith.constant 0 : index
    %c6_295 = arith.constant 6 : index
    %c4_296 = arith.constant 4 : index
    %569 = vector.load %arg4[%c0_294, %c6_295, %c4_296] : memref<2x22x22xf32, #tpu.memory_space<vmem>>, vector<1x16x16xf32>
    %570 = vector.shape_cast %569 : vector<1x16x16xf32> to vector<16x16xf32>
    %571 = vector.broadcast %568 : f32 to vector<16x16xf32>
    %572 = arith.mulf %571, %570 : vector<16x16xf32>
    %573 = arith.addf %561, %572 : vector<16x16xf32>
    %c95 = arith.constant 95 : index
    %574 = memref.load %arg2[%c95] : memref<98xf32, #tpu.memory_space<smem>>
    %c1_297 = arith.constant 1 : index
    %c6_298 = arith.constant 6 : index
    %c4_299 = arith.constant 4 : index
    %575 = vector.load %arg4[%c1_297, %c6_298, %c4_299] : memref<2x22x22xf32, #tpu.memory_space<vmem>>, vector<1x16x16xf32>
    %576 = vector.shape_cast %575 : vector<1x16x16xf32> to vector<16x16xf32>
    %577 = vector.broadcast %574 : f32 to vector<16x16xf32>
    %578 = arith.mulf %577, %576 : vector<16x16xf32>
    %579 = arith.addf %567, %578 : vector<16x16xf32>
    %c47 = arith.constant 47 : index
    %580 = memref.load %arg2[%c47] : memref<98xf32, #tpu.memory_space<smem>>
    %c0_300 = arith.constant 0 : index
    %c6_301 = arith.constant 6 : index
    %c5_302 = arith.constant 5 : index
    %581 = vector.load %arg4[%c0_300, %c6_301, %c5_302] : memref<2x22x22xf32, #tpu.memory_space<vmem>>, vector<1x16x16xf32>
    %582 = vector.shape_cast %581 : vector<1x16x16xf32> to vector<16x16xf32>
    %583 = vector.broadcast %580 : f32 to vector<16x16xf32>
    %584 = arith.mulf %583, %582 : vector<16x16xf32>
    %585 = arith.addf %573, %584 : vector<16x16xf32>
    %c96 = arith.constant 96 : index
    %586 = memref.load %arg2[%c96] : memref<98xf32, #tpu.memory_space<smem>>
    %c1_303 = arith.constant 1 : index
    %c6_304 = arith.constant 6 : index
    %c5_305 = arith.constant 5 : index
    %587 = vector.load %arg4[%c1_303, %c6_304, %c5_305] : memref<2x22x22xf32, #tpu.memory_space<vmem>>, vector<1x16x16xf32>
    %588 = vector.shape_cast %587 : vector<1x16x16xf32> to vector<16x16xf32>
    %589 = vector.broadcast %586 : f32 to vector<16x16xf32>
    %590 = arith.mulf %589, %588 : vector<16x16xf32>
    %591 = arith.addf %579, %590 : vector<16x16xf32>
    %c48 = arith.constant 48 : index
    %592 = memref.load %arg2[%c48] : memref<98xf32, #tpu.memory_space<smem>>
    %c0_306 = arith.constant 0 : index
    %c6_307 = arith.constant 6 : index
    %c6_308 = arith.constant 6 : index
    %593 = vector.load %arg4[%c0_306, %c6_307, %c6_308] : memref<2x22x22xf32, #tpu.memory_space<vmem>>, vector<1x16x16xf32>
    %594 = vector.shape_cast %593 : vector<1x16x16xf32> to vector<16x16xf32>
    %595 = vector.broadcast %592 : f32 to vector<16x16xf32>
    %596 = arith.mulf %595, %594 : vector<16x16xf32>
    %597 = arith.addf %585, %596 : vector<16x16xf32>
    %c97 = arith.constant 97 : index
    %598 = memref.load %arg2[%c97] : memref<98xf32, #tpu.memory_space<smem>>
    %c1_309 = arith.constant 1 : index
    %c6_310 = arith.constant 6 : index
    %c6_311 = arith.constant 6 : index
    %599 = vector.load %arg4[%c1_309, %c6_310, %c6_311] : memref<2x22x22xf32, #tpu.memory_space<vmem>>, vector<1x16x16xf32>
    %600 = vector.shape_cast %599 : vector<1x16x16xf32> to vector<16x16xf32>
    %601 = vector.broadcast %598 : f32 to vector<16x16xf32>
    %602 = arith.mulf %601, %600 : vector<16x16xf32>
    %603 = arith.addf %591, %602 : vector<16x16xf32>
    %604 = arith.addf %597, %603 : vector<16x16xf32>
    %605 = arith.negf %604 : vector<16x16xf32>
    %606 = math.exp %605 : vector<16x16xf32>
    %cst_312 = arith.constant 1.000000e+00 : f32
    %607 = vector.broadcast %cst_312 : f32 to vector<16x16xf32>
    %608 = arith.addf %607, %606 : vector<16x16xf32>
    %609 = arith.divf %607, %608 : vector<16x16xf32>
    %c0_313 = arith.constant 0 : index
    %c0_314 = arith.constant 0 : index
    %c0_315 = arith.constant 0 : index
    %c0_316 = arith.constant 0 : index
    %610 = vector.load %arg3[%c0_313, %c0_314, %c0_315, %c0_316] : memref<1x1x16x16xf32, #tpu.memory_space<vmem>>, vector<1x1x16x16xf32>
    %611 = vector.shape_cast %610 : vector<1x1x16x16xf32> to vector<16x16xf32>
    %612 = vector.shape_cast %609 : vector<16x16xf32> to vector<1x1x16x16xf32>
    tpu.vector_store %arg3[%c0_313, %c0_314, %c0_315, %c0_316], %612 {strides = array<i32>} : memref<1x1x16x16xf32, #tpu.memory_space<vmem>>, vector<1x1x16x16xf32>,
    return
  }
  func.func @transform_0(%arg0: i32) -> (i32, i32, i32, i32) {
    %c0_i32 = arith.constant 0 : i32
    %c0_i32_0 = arith.constant 0 : i32
    %c0_i32_1 = arith.constant 0 : i32
    %c0_i32_2 = arith.constant 0 : i32
    return %arg0, %c0_i32, %c0_i32_0, %c0_i32_1 : i32, i32, i32, i32
  }
  func.func @transform_1(%arg0: i32) -> i32 {
    %c0_i32 = arith.constant 0 : i32
    %c0_i32_0 = arith.constant 0 : i32
    return %c0_i32 : i32
  }
  func.func @transform_2(%arg0: i32) -> (i32, i32, i32, i32) {
    %c0_i32 = arith.constant 0 : i32
    %c0_i32_0 = arith.constant 0 : i32
    %c0_i32_1 = arith.constant 0 : i32
    %c0_i32_2 = arith.constant 0 : i32
    return %arg0, %c0_i32, %c0_i32_0, %c0_i32_1 : i32, i32, i32, i32
  }
}

</mosaic_0001>

<llo_original>
// kernel: spatial_attention.1
$region0: #{spatial_attention.1}
  #allocation0 [shape = 'u32[]', space=smem, size = 0x4, offset = 0x4, fixed_abs, tag = 'smem constant byte address 0x4 - core index']
  #allocation1 [shape = 'u32[144,128]{1,0:T(1,128)}', space=vmem, size = 0x12000, scoped, tag = 'internal scratch']
  #allocation2 [shape = 'f32[2,22,22]{2,1,0:T(8,128)}', space=vmem, size = 0x6000, scoped, tag = 'scratch operand']
  %s0 = inlined_call_operand.hbm [shape: f32[2,4,16,16], index: 0, kind: input, shape index: {}]
  %s1 = inlined_call_operand.vmem [shape: f32[98], index: 1, kind: input, shape index: {}]
  %s2 = inlined_call_operand.hbm [shape: f32[2,1,16,16], index: 2, kind: output, shape index: {}]
  %s3 = sld [smem:[#allocation0]]
  $region49: #{spatial_attention.1} parent=0
    _
  %s5 = ssub.s32 1, %s3
  %s6 = scalar_select 0, %s5, %s3
  $region1: #{spatial_attention.1} parent=0
    #allocation3 [shape = 'u8[65536]{0}', space=vmem, size = 0x10000, scoped, tag = 'input window, operand 0']
    #allocation4 [shape = 's32[2]{0}', space=sflag, size = 0x8, scoped, tag = 'scoped memory for spatial_attention.1']
    #allocation5 [shape = 's32[2]{0}', space=sflag, size = 0x8, scoped, tag = 'scoped memory for spatial_attention.1']
    #allocation6 [shape = 's32[2]{0}', space=sflag, size = 0x8, scoped, tag = 'scoped memory for spatial_attention.1']
    #allocation7 [shape = 'u8[512]{0}', space=smem, size = 0x200, scoped, tag = 'input window, operand 1, single buffered']
    #allocation8 [shape = 'u8[16384]{0}', space=vmem, size = 0x4000, scoped, tag = 'output window, operand 0']
    %7 = vsyncpa [#allocation4], 0
    %s8 = scalar_lea.sflag [#allocation4], 1
    %9 = vsyncpa %s8, 0
    %10 = vsyncpa [#allocation6], 0
    %11 = vsyncpa [#allocation5], 0
    %s12 = scalar_lea.sflag [#allocation5], 1
    %13 = vsyncpa %s12, 0
    loop: start=0, step=1, limit=4
    $region2: #{spatial_attention.1} parent=1 // loop_pre_header
      _
    $region3: #{spatial_attention.1} parent=1 // loop_header
      %s15 = sphi 0, %s19
      %p16 = scmp.ge.s32.totalorder %s15, 4
      %s25 = sphi 0, %s27
      %s28 = sphi 0, %s25
      %s29 = sphi 0, %s28
      %s45 = sphi 0, %s29
      %s49 = sphi 0, %s49
      %s51 = sphi 0, %s49
      %s52 = sphi 0, %s51
      %s66 = sphi 0, %s52
      %s72 = sphi 0, %s74
      %s75 = sphi 0, %s72
      %s76 = sphi 0, %s75
      %s92 = sphi 0, %s76
    $region4: #{spatial_attention.1} parent=1 // loop_header_branch
      %18 = sbr.rel (%p16) target = $region8
    $region5: #{spatial_attention.1} parent=1 // loop_body
      %s20 = ssub.s32 %s15, 1
      %s21 = ssub.s32 %s15, 2
      %s22 = sadd.s32 %s15, 1
      %s23 = ssub.s32 %s15, %s22
      %p24 = scmp.eq.s32.totalorder %s23, 0
      %s26 = sadd.s32 %s25, 1
      %s27 = scalar_select %p24, %s25, %s26
      %p30 = pneg %p24
      %p31 = scmp.eq.s32.totalorder %s15, 1
      %p32 = por %p30, %p31
      %p33 = scmp.ne.s32.totalorder %s25, %s28
      %p34 = scmp.eq.s32.totalorder %s15, 0
      %p35 = por %p33, %p34
      %p36 = scmp.ne.s32.totalorder %s25, %s28
      %p37 = scmp.eq.s32.totalorder %s20, 1
      %p38 = por %p36, %p37
      %p39 = scmp.ne.s32.totalorder %s28, %s29
      %p40 = scmp.eq.s32.totalorder %s20, 0
      %p41 = por %p39, %p40
      %p42 = scmp.ne.s32.totalorder %s28, %s29
      %p43 = scmp.eq.s32.totalorder %s21, 1
      %p44 = por %p42, %p43
      %p46 = scmp.ne.s32.totalorder %s29, %s45
      %p47 = scmp.eq.s32.totalorder %s21, 0
      %p48 = por %p46, %p47
      %s50 = sadd.s32 %s49, 1
      %p53 = scmp.eq.s32.totalorder %s15, 1
      %p54 = scmp.ne.s32.totalorder %s49, %s51
      %p55 = scmp.eq.s32.totalorder %s15, 0
      %p56 = por %p54, %p55
      %p57 = scmp.ne.s32.totalorder %s49, %s51
      %p58 = scmp.eq.s32.totalorder %s20, 1
      %p59 = por %p57, %p58
      %p60 = scmp.ne.s32.totalorder %s51, %s52
      %p61 = scmp.eq.s32.totalorder %s20, 0
      %p62 = por %p60, %p61
      %p63 = scmp.ne.s32.totalorder %s51, %s52
      %p64 = scmp.eq.s32.totalorder %s21, 1
      %p65 = por %p63, %p64
      %p67 = scmp.ne.s32.totalorder %s52, %s66
      %p68 = scmp.eq.s32.totalorder %s21, 0
      %p69 = por %p67, %p68
      %s70 = ssub.s32 %s15, %s22
      %p71 = scmp.eq.s32.totalorder %s70, 0
      %s73 = sadd.s32 %s72, 1
      %s74 = scalar_select %p71, %s72, %s73
      %p77 = pneg %p71
      %p78 = scmp.eq.s32.totalorder %s15, 1
      %p79 = por %p77, %p78
      %p80 = scmp.ne.s32.totalorder %s72, %s75
      %p81 = scmp.eq.s32.totalorder %s15, 0
      %p82 = por %p80, %p81
      %p83 = scmp.ne.s32.totalorder %s72, %s75
      %p84 = scmp.eq.s32.totalorder %s20, 1
      %p85 = por %p83, %p84
      %p86 = scmp.ne.s32.totalorder %s75, %s76
      %p87 = scmp.eq.s32.totalorder %s20, 0
      %p88 = por %p86, %p87
      %p89 = scmp.ne.s32.totalorder %s75, %s76
      %p90 = scmp.eq.s32.totalorder %s21, 1
      %p91 = por %p89, %p90
      %p93 = scmp.ne.s32.totalorder %s76, %s92
      %p94 = scmp.eq.s32.totalorder %s21, 0
      %p95 = por %p93, %p94
      %p96 = scmp.le.s32.totalorder 1, %s15
      %p97 = scmp.lt.s32.totalorder %s15, 3
      %p98 = pnand %p96, %p97
      %p99 = pneg %p98
      // Predicated region
      $region9: #{spatial_attention.1} parent=5 // pred_check
        _
      $region10: #{spatial_attention.1} parent=5 // pred_check_branch
        %101 = sbr.rel (%p98) target = $region12
      $region11: #{spatial_attention.1} parent=5 // pred_region
        %s102 = ssub.s32 %s15, 1
        // Predicated region
        $region13: #{spatial_attention.1} parent=11 // pred_check
          %p103 = pneg %p62
        $region14: #{spatial_attention.1} parent=11 // pred_check_branch
          %105 = sbr.rel (%p103) target = $region16
        $region15: #{spatial_attention.1} parent=11 // pred_region
          %s107 = ssub.s32 16, 16
          %108 = vsyncadd [#allocation6], %s107
          %s110 = sshll.u32 %s1, 4
          %s111 = int_to_ptr.vmem [resolvable:$true] %s110
          %113 = dma.vmem_to_smem %s111, 16, [#allocation7], [#allocation6]
        $region16: #{spatial_attention.1} parent=11 // pred_fallthru
          _
      $region12: #{spatial_attention.1} parent=5 // pred_fallthru
        _
      %p114 = scmp.lt.s32.totalorder %s15, 2
      // Predicated region
      $region17: #{spatial_attention.1} parent=5 // pred_check
        %p115 = pneg %p114
      $region18: #{spatial_attention.1} parent=5 // pred_check_branch
        %117 = sbr.rel (%p115) target = $region20
      $region19: #{spatial_attention.1} parent=5 // pred_region
        // Predicated region
        $region21: #{spatial_attention.1} parent=19 // pred_check
          %p118 = pneg %p35
        $region22: #{spatial_attention.1} parent=19 // pred_check_branch
          %120 = sbr.rel (%p118) target = $region24
        $region23: #{spatial_attention.1} parent=19 // pred_region
          %s121 = sand.u32 %s25, 1
          %s122 = scalar_lea.sflag [#allocation4], %s121
          %s123 = sand.u32 %s25, 1
          %s124 = smul.addr %s123, 64
          %s125 = scalar_lea.vmem [#allocation3], %s124
          %s127 = ssub.s32 1024, 1024
          %128 = vsyncadd %s122, %s127
          %s129 = smul.addr %s15, 8
          %s130 = smul.addr %s129, 128
          %s131 = scalar_lea.hbm %s0, %s130
          %s132 = sshll.u32 %s125, 4
          %s133 = int_to_ptr.vmem [resolvable:$true] %s132
          %138 = dma.hbm_to_vmem [thread:$0]  %s131, 1024, %s133, %s122, 128, 128, 8
        $region24: #{spatial_attention.1} parent=19 // pred_fallthru
          _
      $region20: #{spatial_attention.1} parent=5 // pred_fallthru
        _
      %p139 = scmp.le.s32.totalorder 1, %s15
      %p140 = scmp.lt.s32.totalorder %s15, 3
      %p141 = pnand %p139, %p140
      %p142 = pneg %p141
      // Predicated region
      $region25: #{spatial_attention.1} parent=5 // pred_check
        _
      $region26: #{spatial_attention.1} parent=5 // pred_check_branch
        %144 = sbr.rel (%p141) target = $region28
      $region27: #{spatial_attention.1} parent=5 // pred_region
        %s145 = ssub.s32 %s15, 1
        %s146 = sand.u32 %s28, 1
        %s147 = scalar_lea.sflag [#allocation4], %s146
        %s148 = sand.u32 %s28, 1
        %s149 = smul.addr %s148, 64
        %s150 = scalar_lea.vmem [#allocation3], %s149
        // Predicated region
        $region29: #{spatial_attention.1} parent=27 // pred_check
          %p151 = pneg %p41
        $region30: #{spatial_attention.1} parent=27 // pred_check_branch
          %153 = sbr.rel (%p151) target = $region32
        $region31: #{spatial_attention.1} parent=27 // pred_region
          %154 = dma.done %s147, 1024
        $region32: #{spatial_attention.1} parent=27 // pred_fallthru
          _
        // Predicated region
        $region33: #{spatial_attention.1} parent=27 // pred_check
          %p155 = pneg %p62
        $region34: #{spatial_attention.1} parent=27 // pred_check_branch
          %157 = sbr.rel (%p155) target = $region36
        $region35: #{spatial_attention.1} parent=27 // pred_region
          %158 = dma.done [#allocation6], 16
        $region36: #{spatial_attention.1} parent=27 // pred_fallthru
          _
        %159 = sfence
        %s160 = sand.u32 %s28, 1
        %s161 = scalar_lea.sflag [#allocation4], %s160
        %s162 = sand.u32 %s28, 1
        %s163 = smul.addr %s162, 64
        %s164 = scalar_lea.vmem [#allocation3], %s163
        %p165 = pneg %p41
        %p166 = pneg %p38
        %p167 = pneg %p62
        %p168 = pneg %p59
        %p169 = pneg %p88
        %p170 = pneg %p85
        %s171 = sand.u32 %s75, 1
        %s172 = scalar_lea.sflag [#allocation5], %s171
        %s173 = sand.u32 %s75, 1
        %s174 = smul.addr %s173, 16
        %s175 = scalar_lea.vmem [#allocation8], %s174
        %v176 = vld [vmem:[%s150] sm:$0xff]
        %v177 = vld [vmem:[%s150 + $0x8] sm:$0xff]
        %v178 = vld [vmem:[%s150 + $0x10] sm:$0xff]
        %v179 = vld [vmem:[%s150 + $0x18] sm:$0xff]
        %v180 = vld [vmem:[%s150 + $0x20] sm:$0xff]
        %v181 = vld [vmem:[%s150 + $0x28] sm:$0xff]
        %v182 = vld [vmem:[%s150 + $0x30] sm:$0xff]
        %v183 = vld [vmem:[%s150 + $0x38] sm:$0xff]
        %vm184 = vcmask 130048
        %v185 = vsel %vm184, %v176, 0.0
        %v186 = vsel %vm184, %v178, 0.0
        %v187 = vadd.f32 %v185, %v186
        %v188 = vsel %vm184, %v180, 0.0
        %v189 = vadd.f32 %v187, %v188
        %v190 = vsel %vm184, %v182, 0.0
        %v191 = vadd.f32 %v189, %v190
        %v192 = vsel %vm184, %v177, 0.0
        %v193 = vsel %vm184, %v179, 0.0
        %v194 = vadd.f32 %v192, %v193
        %v195 = vsel %vm184, %v181, 0.0
        %v196 = vadd.f32 %v194, %v195
        %v197 = vsel %vm184, %v183, 0.0
        %v198 = vadd.f32 %v196, %v197
        %v199 = vmul.f32 %v191, 0.25
        %v200 = vmul.f32 %v198, 0.25
        %v201 = vsel %vm184, %v176, -inf
        %v202 = vsel %vm184, %v178, -inf
        %v203 = vsel %vm184, %v180, -inf
        %v204 = vmax.f32 %v201, %v203
        %v205 = vsel %vm184, %v182, -inf
        %v206 = vmax.f32 %v202, %v205
        %v207 = vmax.f32 %v204, %v206
        %v208 = vsel %vm184, %v177, -inf
        %v209 = vsel %vm184, %v179, -inf
        %v210 = vsel %vm184, %v181, -inf
        %v211 = vmax.f32 %v208, %v210
        %v212 = vsel %vm184, %v183, -inf
        %v213 = vmax.f32 %v209, %v212
        %v214 = vmax.f32 %v211, %v213
        %vm215 = vcmask 179200
        %216 = vst.msk [vmem:[#allocation2] sm:$0xff] %vm215, 0.0
        %217 = vst.msk [vmem:[#allocation2 + $0x8] sm:$0xff] %vm215, 0.0
        %vm218 = vcmask 177152
        %219 = vst.msk [vmem:[#allocation2 + $0x10] sm:$0x3f] %vm218, 0.0
        %220 = vst.msk [vmem:[#allocation2 + $0x18] sm:$0xff] %vm215, 0.0
        %221 = vst.msk [vmem:[#allocation2 + $0x20] sm:$0xff] %vm215, 0.0
        %222 = vst.msk [vmem:[#allocation2 + $0x28] sm:$0x3f] %vm218, 0.0
        %225 = vrot.lane.b32.xlu0 %v199, 3
        %v226 = vpop.permute.xlu0 %225
        %227 = vrot.lane.b32.xlu0 %v200, 3
        %v228 = vpop.permute.xlu0 %227
        %vm231 = vcmask 154648
        %232 = vst.msk [vmem:[#allocation2 + $0x3] sm:$0xff] %vm231, %v226
        %233 = vst.msk [vmem:[#allocation2 + $0xb] sm:$0xff] %vm231, %v228
        %236 = vrot.lane.b32.xlu0 %v207, 3
        %v237 = vpop.permute.xlu0 %236
        %238 = vrot.lane.b32.xlu0 %v214, 3
        %v239 = vpop.permute.xlu0 %238
        %s242 = scalar_lea.vmem [#allocation2], 24
        %243 = vst.msk [vmem:[%s242 + $0x3] sm:$0xff] %vm231, %v237
        %244 = vst.msk [vmem:[%s242 + $0xb] sm:$0xff] %vm231, %v239
        %s245 = sld [smem:[#allocation7]]
        %v246 = vld [vmem:[#allocation2] sm:$0xff]
        %v247 = vld [vmem:[#allocation2 + $0x8] sm:$0xff]
        %v248 = vstv %s245
        %v249 = vmul.f32 %v248, %v246
        %v250 = vmul.f32 %v248, %v247
        %v251 = vadd.f32 %v249, 0.0
        %v252 = vadd.f32 %v250, 0.0
        %s253 = sld [smem:[#allocation7 + $0x31]]
        %v254 = vld [vmem:[%s242] sm:$0xff]
        %v255 = vld [vmem:[%s242 + $0x8] sm:$0xff]
        %v256 = vstv %s253
        %v257 = vmul.f32 %v256, %v254
        %v258 = vmul.f32 %v256, %v255
        %v259 = vadd.f32 %v257, 0.0
        %v260 = vadd.f32 %v258, 0.0
        %s261 = sld [smem:[#allocation7 + $0x1]]
        %v262 = vstv %s261
        %v263 = vmul.f32 %v262, %v246
        %v264 = vmul.f32 %v262, %v247
        %267 = vrot.lane.b32.xlu0 %v263, 127
        %v268 = vpop.permute.xlu0 %267
        %269 = vrot.lane.b32.xlu0 %v264, 127
        %v270 = vpop.permute.xlu0 %269
        %v273 = vadd.f32 %v251, %v268
        %v274 = vadd.f32 %v252, %v270
        %s275 = sld [smem:[#allocation7 + $0x32]]
        %v276 = vstv %s275
        %v277 = vmul.f32 %v276, %v254
        %v278 = vmul.f32 %v276, %v255
        %281 = vrot.lane.b32.xlu0 %v277, 127
        %v282 = vpop.permute.xlu0 %281
        %283 = vrot.lane.b32.xlu0 %v278, 127
        %v284 = vpop.permute.xlu0 %283
        %v287 = vadd.f32 %v259, %v282
        %v288 = vadd.f32 %v260, %v284
        %s289 = sld [smem:[#allocation7 + $0x2]]
        %v290 = vstv %s289
        %v291 = vmul.f32 %v290, %v246
        %v292 = vmul.f32 %v290, %v247
        %295 = vrot.lane.b32.xlu0 %v291, 126
        %v296 = vpop.permute.xlu0 %295
        %297 = vrot.lane.b32.xlu0 %v292, 126
        %v298 = vpop.permute.xlu0 %297
        %v301 = vadd.f32 %v273, %v296
        %v302 = vadd.f32 %v274, %v298
        %s303 = sld [smem:[#allocation7 + $0x33]]
        %v304 = vstv %s303
        %v305 = vmul.f32 %v304, %v254
        %v306 = vmul.f32 %v304, %v255
        %309 = vrot.lane.b32.xlu0 %v305, 126
        %v310 = vpop.permute.xlu0 %309
        %311 = vrot.lane.b32.xlu0 %v306, 126
        %v312 = vpop.permute.xlu0 %311
        %v315 = vadd.f32 %v287, %v310
        %v316 = vadd.f32 %v288, %v312
        %s317 = sld [smem:[#allocation7 + $0x3]]
        %v318 = vstv %s317
        %v319 = vmul.f32 %v318, %v246
        %v320 = vmul.f32 %v318, %v247
        %323 = vrot.lane.b32.xlu0 %v319, 125
        %v324 = vpop.permute.xlu0 %323
        %325 = vrot.lane.b32.xlu0 %v320, 125
        %v326 = vpop.permute.xlu0 %325
        %v329 = vadd.f32 %v301, %v324
        %v330 = vadd.f32 %v302, %v326
        %s331 = sld [smem:[#allocation7 + $0x34]]
        %v332 = vstv %s331
        %v333 = vmul.f32 %v332, %v254
        %v334 = vmul.f32 %v332, %v255
        %337 = vrot.lane.b32.xlu0 %v333, 125
        %v338 = vpop.permute.xlu0 %337
        %339 = vrot.lane.b32.xlu0 %v334, 125
        %v340 = vpop.permute.xlu0 %339
        %v343 = vadd.f32 %v315, %v338
        %v344 = vadd.f32 %v316, %v340
        %s345 = sld [smem:[#allocation7 + $0x4]]
        %v346 = vstv %s345
        %v347 = vmul.f32 %v346, %v246
        %v348 = vmul.f32 %v346, %v247
        %351 = vrot.lane.b32.xlu0 %v347, 124
        %v352 = vpop.permute.xlu0 %351
        %353 = vrot.lane.b32.xlu0 %v348, 124
        %v354 = vpop.permute.xlu0 %353
        %v357 = vadd.f32 %v329, %v352
        %v358 = vadd.f32 %v330, %v354
        %s359 = sld [smem:[#allocation7 + $0x35]]
        %v360 = vstv %s359
        %v361 = vmul.f32 %v360, %v254
        %v362 = vmul.f32 %v360, %v255
        %365 = vrot.lane.b32.xlu0 %v361, 124
        %v366 = vpop.permute.xlu0 %365
        %367 = vrot.lane.b32.xlu0 %v362, 124
        %v368 = vpop.permute.xlu0 %367
        %v371 = vadd.f32 %v343, %v366
        %v372 = vadd.f32 %v344, %v368
        %s373 = sld [smem:[#allocation7 + $0x5]]
        %v374 = vstv %s373
        %v375 = vmul.f32 %v374, %v246
        %v376 = vmul.f32 %v374, %v247
        %379 = vrot.lane.b32.xlu0 %v375, 123
        %v380 = vpop.permute.xlu0 %379
        %381 = vrot.lane.b32.xlu0 %v376, 123
        %v382 = vpop.permute.xlu0 %381
        %v385 = vadd.f32 %v357, %v380
        %v386 = vadd.f32 %v358, %v382
        %s387 = sld [smem:[#allocation7 + $0x36]]
        %v388 = vstv %s387
        %v389 = vmul.f32 %v388, %v254
        %v390 = vmul.f32 %v388, %v255
        %393 = vrot.lane.b32.xlu0 %v389, 123
        %v394 = vpop.permute.xlu0 %393
        %395 = vrot.lane.b32.xlu0 %v390, 123
        %v396 = vpop.permute.xlu0 %395
        %v399 = vadd.f32 %v371, %v394
        %v400 = vadd.f32 %v372, %v396
        %s401 = sld [smem:[#allocation7 + $0x6]]
        %v402 = vstv %s401
        %v403 = vmul.f32 %v402, %v246
        %v404 = vmul.f32 %v402, %v247
        %407 = vrot.lane.b32.xlu0 %v403, 122
        %v408 = vpop.permute.xlu0 %407
        %409 = vrot.lane.b32.xlu0 %v404, 122
        %v410 = vpop.permute.xlu0 %409
        %v413 = vadd.f32 %v385, %v408
        %v414 = vadd.f32 %v386, %v410
        %s415 = sld [smem:[#allocation7 + $0x37]]
        %v416 = vstv %s415
        %v417 = vmul.f32 %v416, %v254
        %v418 = vmul.f32 %v416, %v255
        %421 = vrot.lane.b32.xlu0 %v417, 122
        %v422 = vpop.permute.xlu0 %421
        %423 = vrot.lane.b32.xlu0 %v418, 122
        %v424 = vpop.permute.xlu0 %423
        %v427 = vadd.f32 %v399, %v422
        %v428 = vadd.f32 %v400, %v424
        %s429 = sld [smem:[#allocation7 + $0x7]]
        %v430 = vld [vmem:[#allocation2 + $0x1] sm:$0xff]
        %v431 = vld [vmem:[#allocation2 + $0x9] sm:$0xff]
        %v432 = vstv %s429
        %v433 = vmul.f32 %v432, %v430
        %v434 = vmul.f32 %v432, %v431
        %v435 = vadd.f32 %v413, %v433
        %v436 = vadd.f32 %v414, %v434
        %s437 = sld [smem:[#allocation7 + $0x38]]
        %v438 = vld [vmem:[%s242 + $0x1] sm:$0xff]
        %v439 = vld [vmem:[%s242 + $0x9] sm:$0xff]
        %v440 = vstv %s437
        %v441 = vmul.f32 %v440, %v438
        %v442 = vmul.f32 %v440, %v439
        %v443 = vadd.f32 %v427, %v441
        %v444 = vadd.f32 %v428, %v442
        %s445 = sld [smem:[#allocation7 + $0x8]]
        %v446 = vstv %s445
        %v447 = vmul.f32 %v446, %v430
        %v448 = vmul.f32 %v446, %v431
        %451 = vrot.lane.b32.xlu0 %v447, 127
        %v452 = vpop.permute.xlu0 %451
        %453 = vrot.lane.b32.xlu0 %v448, 127
        %v454 = vpop.permute.xlu0 %453
        %v457 = vadd.f32 %v435, %v452
        %v458 = vadd.f32 %v436, %v454
        %s459 = sld [smem:[#allocation7 + $0x39]]
        %v460 = vstv %s459
        %v461 = vmul.f32 %v460, %v438
        %v462 = vmul.f32 %v460, %v439
        %465 = vrot.lane.b32.xlu0 %v461, 127
        %v466 = vpop.permute.xlu0 %465
        %467 = vrot.lane.b32.xlu0 %v462, 127
        %v468 = vpop.permute.xlu0 %467
        %v471 = vadd.f32 %v443, %v466
        %v472 = vadd.f32 %v444, %v468
        %s473 = sld [smem:[#allocation7 + $0x9]]
        %v474 = vstv %s473
        %v475 = vmul.f32 %v474, %v430
        %v476 = vmul.f32 %v474, %v431
        %479 = vrot.lane.b32.xlu0 %v475, 126
        %v480 = vpop.permute.xlu0 %479
        %481 = vrot.lane.b32.xlu0 %v476, 126
        %v482 = vpop.permute.xlu0 %481
        %v485 = vadd.f32 %v457, %v480
        %v486 = vadd.f32 %v458, %v482
        %s487 = sld [smem:[#allocation7 + $0x3a]]
        %v488 = vstv %s487
        %v489 = vmul.f32 %v488, %v438
        %v490 = vmul.f32 %v488, %v439
        %493 = vrot.lane.b32.xlu0 %v489, 126
        %v494 = vpop.permute.xlu0 %493
        %495 = vrot.lane.b32.xlu0 %v490, 126
        %v496 = vpop.permute.xlu0 %495
        %v499 = vadd.f32 %v471, %v494
        %v500 = vadd.f32 %v472, %v496
        %s501 = sld [smem:[#allocation7 + $0xa]]
        %v502 = vstv %s501
        %v503 = vmul.f32 %v502, %v430
        %v504 = vmul.f32 %v502, %v431
        %507 = vrot.lane.b32.xlu0 %v503, 125
        %v508 = vpop.permute.xlu0 %507
        %509 = vrot.lane.b32.xlu0 %v504, 125
        %v510 = vpop.permute.xlu0 %509
        %v513 = vadd.f32 %v485, %v508
        %v514 = vadd.f32 %v486, %v510
        %s515 = sld [smem:[#allocation7 + $0x3b]]
        %v516 = vstv %s515
        %v517 = vmul.f32 %v516, %v438
        %v518 = vmul.f32 %v516, %v439
        %521 = vrot.lane.b32.xlu0 %v517, 125
        %v522 = vpop.permute.xlu0 %521
        %523 = vrot.lane.b32.xlu0 %v518, 125
        %v524 = vpop.permute.xlu0 %523
        %v527 = vadd.f32 %v499, %v522
        %v528 = vadd.f32 %v500, %v524
        %s529 = sld [smem:[#allocation7 + $0xb]]
        %v530 = vstv %s529
        %v531 = vmul.f32 %v530, %v430
        %v532 = vmul.f32 %v530, %v431
        %535 = vrot.lane.b32.xlu0 %v531, 124
        %v536 = vpop.permute.xlu0 %535
        %537 = vrot.lane.b32.xlu0 %v532, 124
        %v538 = vpop.permute.xlu0 %537
        %v541 = vadd.f32 %v513, %v536
        %v542 = vadd.f32 %v514, %v538
        %s543 = sld [smem:[#allocation7 + $0x3c]]
        %v544 = vstv %s543
        %v545 = vmul.f32 %v544, %v438
        %v546 = vmul.f32 %v544, %v439
        %549 = vrot.lane.b32.xlu0 %v545, 124
        %v550 = vpop.permute.xlu0 %549
        %551 = vrot.lane.b32.xlu0 %v546, 124
        %v552 = vpop.permute.xlu0 %551
        %v555 = vadd.f32 %v527, %v550
        %v556 = vadd.f32 %v528, %v552
        %s557 = sld [smem:[#allocation7 + $0xc]]
        %v558 = vstv %s557
        %v559 = vmul.f32 %v558, %v430
        %v560 = vmul.f32 %v558, %v431
        %563 = vrot.lane.b32.xlu0 %v559, 123
        %v564 = vpop.permute.xlu0 %563
        %565 = vrot.lane.b32.xlu0 %v560, 123
        %v566 = vpop.permute.xlu0 %565
        %v569 = vadd.f32 %v541, %v564
        %v570 = vadd.f32 %v542, %v566
        %s571 = sld [smem:[#allocation7 + $0x3d]]
        %v572 = vstv %s571
        %v573 = vmul.f32 %v572, %v438
        %v574 = vmul.f32 %v572, %v439
        %577 = vrot.lane.b32.xlu0 %v573, 123
        %v578 = vpop.permute.xlu0 %577
        %579 = vrot.lane.b32.xlu0 %v574, 123
        %v580 = vpop.permute.xlu0 %579
        %v583 = vadd.f32 %v555, %v578
        %v584 = vadd.f32 %v556, %v580
        %s585 = sld [smem:[#allocation7 + $0xd]]
        %v586 = vstv %s585
        %v587 = vmul.f32 %v586, %v430
        %v588 = vmul.f32 %v586, %v431
        %591 = vrot.lane.b32.xlu0 %v587, 122
        %v592 = vpop.permute.xlu0 %591
        %593 = vrot.lane.b32.xlu0 %v588, 122
        %v594 = vpop.permute.xlu0 %593
        %v597 = vadd.f32 %v569, %v592
        %v598 = vadd.f32 %v570, %v594
        %s599 = sld [smem:[#allocation7 + $0x3e]]
        %v600 = vstv %s599
        %v601 = vmul.f32 %v600, %v438
        %v602 = vmul.f32 %v600, %v439
        %605 = vrot.lane.b32.xlu0 %v601, 122
        %v606 = vpop.permute.xlu0 %605
        %607 = vrot.lane.b32.xlu0 %v602, 122
        %v608 = vpop.permute.xlu0 %607
        %v611 = vadd.f32 %v583, %v606
        %v612 = vadd.f32 %v584, %v608
        %s613 = sld [smem:[#allocation7 + $0xe]]
        %v614 = vld [vmem:[#allocation2 + $0x2] sm:$0xff]
        %v615 = vld [vmem:[#allocation2 + $0xa] sm:$0xff]
        %v616 = vstv %s613
        %v617 = vmul.f32 %v616, %v614
        %v618 = vmul.f32 %v616, %v615
        %v619 = vadd.f32 %v597, %v617
        %v620 = vadd.f32 %v598, %v618
        %s621 = sld [smem:[#allocation7 + $0x3f]]
        %v622 = vld [vmem:[%s242 + $0x2] sm:$0xff]
        %v623 = vld [vmem:[%s242 + $0xa] sm:$0xff]
        %v624 = vstv %s621
        %v625 = vmul.f32 %v624, %v622
        %v626 = vmul.f32 %v624, %v623
        %v627 = vadd.f32 %v611, %v625
        %v628 = vadd.f32 %v612, %v626
        %s629 = sld [smem:[#allocation7 + $0xf]]
        %v630 = vstv %s629
        %v631 = vmul.f32 %v630, %v614
        %v632 = vmul.f32 %v630, %v615
        %635 = vrot.lane.b32.xlu0 %v631, 127
        %v636 = vpop.permute.xlu0 %635
        %637 = vrot.lane.b32.xlu0 %v632, 127
        %v638 = vpop.permute.xlu0 %637
        %v641 = vadd.f32 %v619, %v636
        %v642 = vadd.f32 %v620, %v638
        %s643 = sld [smem:[#allocation7 + $0x40]]
        %v644 = vstv %s643
        %v645 = vmul.f32 %v644, %v622
        %v646 = vmul.f32 %v644, %v623
        %649 = vrot.lane.b32.xlu0 %v645, 127
        %v650 = vpop.permute.xlu0 %649
        %651 = vrot.lane.b32.xlu0 %v646, 127
        %v652 = vpop.permute.xlu0 %651
        %v655 = vadd.f32 %v627, %v650
        %v656 = vadd.f32 %v628, %v652
        %s657 = sld [smem:[#allocation7 + $0x10]]
        %v658 = vstv %s657
        %v659 = vmul.f32 %v658, %v614
        %v660 = vmul.f32 %v658, %v615
        %663 = vrot.lane.b32.xlu0 %v659, 126
        %v664 = vpop.permute.xlu0 %663
        %665 = vrot.lane.b32.xlu0 %v660, 126
        %v666 = vpop.permute.xlu0 %665
        %v669 = vadd.f32 %v641, %v664
        %v670 = vadd.f32 %v642, %v666
        %s671 = sld [smem:[#allocation7 + $0x41]]
        %v672 = vstv %s671
        %v673 = vmul.f32 %v672, %v622
        %v674 = vmul.f32 %v672, %v623
        %677 = vrot.lane.b32.xlu0 %v673, 126
        %v678 = vpop.permute.xlu0 %677
        %679 = vrot.lane.b32.xlu0 %v674, 126
        %v680 = vpop.permute.xlu0 %679
        %v683 = vadd.f32 %v655, %v678
        %v684 = vadd.f32 %v656, %v680
        %s685 = sld [smem:[#allocation7 + $0x11]]
        %v686 = vstv %s685
        %v687 = vmul.f32 %v686, %v614
        %v688 = vmul.f32 %v686, %v615
        %691 = vrot.lane.b32.xlu0 %v687, 125
        %v692 = vpop.permute.xlu0 %691
        %693 = vrot.lane.b32.xlu0 %v688, 125
        %v694 = vpop.permute.xlu0 %693
        %v697 = vadd.f32 %v669, %v692
        %v698 = vadd.f32 %v670, %v694
        %s699 = sld [smem:[#allocation7 + $0x42]]
        %v700 = vstv %s699
        %v701 = vmul.f32 %v700, %v622
        %v702 = vmul.f32 %v700, %v623
        %705 = vrot.lane.b32.xlu0 %v701, 125
        %v706 = vpop.permute.xlu0 %705
        %707 = vrot.lane.b32.xlu0 %v702, 125
        %v708 = vpop.permute.xlu0 %707
        %v711 = vadd.f32 %v683, %v706
        %v712 = vadd.f32 %v684, %v708
        %s713 = sld [smem:[#allocation7 + $0x12]]
        %v714 = vstv %s713
        %v715 = vmul.f32 %v714, %v614
        %v716 = vmul.f32 %v714, %v615
        %719 = vrot.lane.b32.xlu0 %v715, 124
        %v720 = vpop.permute.xlu0 %719
        %721 = vrot.lane.b32.xlu0 %v716, 124
        %v722 = vpop.permute.xlu0 %721
        %v725 = vadd.f32 %v697, %v720
        %v726 = vadd.f32 %v698, %v722
        %s727 = sld [smem:[#allocation7 + $0x43]]
        %v728 = vstv %s727
        %v729 = vmul.f32 %v728, %v622
        %v730 = vmul.f32 %v728, %v623
        %733 = vrot.lane.b32.xlu0 %v729, 124
        %v734 = vpop.permute.xlu0 %733
        %735 = vrot.lane.b32.xlu0 %v730, 124
        %v736 = vpop.permute.xlu0 %735
        %v739 = vadd.f32 %v711, %v734
        %v740 = vadd.f32 %v712, %v736
        %s741 = sld [smem:[#allocation7 + $0x13]]
        %v742 = vstv %s741
        %v743 = vmul.f32 %v742, %v614
        %v744 = vmul.f32 %v742, %v615
        %747 = vrot.lane.b32.xlu0 %v743, 123
        %v748 = vpop.permute.xlu0 %747
        %749 = vrot.lane.b32.xlu0 %v744, 123
        %v750 = vpop.permute.xlu0 %749
        %v753 = vadd.f32 %v725, %v748
        %v754 = vadd.f32 %v726, %v750
        %s755 = sld [smem:[#allocation7 + $0x44]]
        %v756 = vstv %s755
        %v757 = vmul.f32 %v756, %v622
        %v758 = vmul.f32 %v756, %v623
        %761 = vrot.lane.b32.xlu0 %v757, 123
        %v762 = vpop.permute.xlu0 %761
        %763 = vrot.lane.b32.xlu0 %v758, 123
        %v764 = vpop.permute.xlu0 %763
        %v767 = vadd.f32 %v739, %v762
        %v768 = vadd.f32 %v740, %v764
        %s769 = sld [smem:[#allocation7 + $0x14]]
        %v770 = vstv %s769
        %v771 = vmul.f32 %v770, %v614
        %v772 = vmul.f32 %v770, %v615
        %775 = vrot.lane.b32.xlu0 %v771, 122
        %v776 = vpop.permute.xlu0 %775
        %777 = vrot.lane.b32.xlu0 %v772, 122
        %v778 = vpop.permute.xlu0 %777
        %v781 = vadd.f32 %v753, %v776
        %v782 = vadd.f32 %v754, %v778
        %s783 = sld [smem:[#allocation7 + $0x45]]
        %v784 = vstv %s783
        %v785 = vmul.f32 %v784, %v622
        %v786 = vmul.f32 %v784, %v623
        %789 = vrot.lane.b32.xlu0 %v785, 122
        %v790 = vpop.permute.xlu0 %789
        %791 = vrot.lane.b32.xlu0 %v786, 122
        %v792 = vpop.permute.xlu0 %791
        %v795 = vadd.f32 %v767, %v790
        %v796 = vadd.f32 %v768, %v792
        %s797 = sld [smem:[#allocation7 + $0x15]]
        %v798 = vld [vmem:[#allocation2 + $0x3] sm:$0xff]
        %v799 = vld [vmem:[#allocation2 + $0xb] sm:$0xff]
        %v800 = vstv %s797
        %v801 = vmul.f32 %v800, %v798
        %v802 = vmul.f32 %v800, %v799
        %v803 = vadd.f32 %v781, %v801
        %v804 = vadd.f32 %v782, %v802
        %s805 = sld [smem:[#allocation7 + $0x46]]
        %v806 = vld [vmem:[%s242 + $0x3] sm:$0xff]
        %v807 = vld [vmem:[%s242 + $0xb] sm:$0xff]
        %v808 = vstv %s805
        %v809 = vmul.f32 %v808, %v806
        %v810 = vmul.f32 %v808, %v807
        %v811 = vadd.f32 %v795, %v809
        %v812 = vadd.f32 %v796, %v810
        %s813 = sld [smem:[#allocation7 + $0x16]]
        %v814 = vstv %s813
        %v815 = vmul.f32 %v814, %v798
        %v816 = vmul.f32 %v814, %v799
        %819 = vrot.lane.b32.xlu0 %v815, 127
        %v820 = vpop.permute.xlu0 %819
        %821 = vrot.lane.b32.xlu0 %v816, 127
        %v822 = vpop.permute.xlu0 %821
        %v825 = vadd.f32 %v803, %v820
        %v826 = vadd.f32 %v804, %v822
        %s827 = sld [smem:[#allocation7 + $0x47]]
        %v828 = vstv %s827
        %v829 = vmul.f32 %v828, %v806
        %v830 = vmul.f32 %v828, %v807
        %833 = vrot.lane.b32.xlu0 %v829, 127
        %v834 = vpop.permute.xlu0 %833
        %835 = vrot.lane.b32.xlu0 %v830, 127
        %v836 = vpop.permute.xlu0 %835
        %v839 = vadd.f32 %v811, %v834
        %v840 = vadd.f32 %v812, %v836
        %s841 = sld [smem:[#allocation7 + $0x17]]
        %v842 = vstv %s841
        %v843 = vmul.f32 %v842, %v798
        %v844 = vmul.f32 %v842, %v799
        %847 = vrot.lane.b32.xlu0 %v843, 126
        %v848 = vpop.permute.xlu0 %847
        %849 = vrot.lane.b32.xlu0 %v844, 126
        %v850 = vpop.permute.xlu0 %849
        %v853 = vadd.f32 %v825, %v848
        %v854 = vadd.f32 %v826, %v850
        %s855 = sld [smem:[#allocation7 + $0x48]]
        %v856 = vstv %s855
        %v857 = vmul.f32 %v856, %v806
        %v858 = vmul.f32 %v856, %v807
        %861 = vrot.lane.b32.xlu0 %v857, 126
        %v862 = vpop.permute.xlu0 %861
        %863 = vrot.lane.b32.xlu0 %v858, 126
        %v864 = vpop.permute.xlu0 %863
        %v867 = vadd.f32 %v839, %v862
        %v868 = vadd.f32 %v840, %v864
        %s869 = sld [smem:[#allocation7 + $0x18]]
        %v870 = vstv %s869
        %v871 = vmul.f32 %v870, %v798
        %v872 = vmul.f32 %v870, %v799
        %875 = vrot.lane.b32.xlu0 %v871, 125
        %v876 = vpop.permute.xlu0 %875
        %877 = vrot.lane.b32.xlu0 %v872, 125
        %v878 = vpop.permute.xlu0 %877
        %v881 = vadd.f32 %v853, %v876
        %v882 = vadd.f32 %v854, %v878
        %s883 = sld [smem:[#allocation7 + $0x49]]
        %v884 = vstv %s883
        %v885 = vmul.f32 %v884, %v806
        %v886 = vmul.f32 %v884, %v807
        %889 = vrot.lane.b32.xlu0 %v885, 125
        %v890 = vpop.permute.xlu0 %889
        %891 = vrot.lane.b32.xlu0 %v886, 125
        %v892 = vpop.permute.xlu0 %891
        %v895 = vadd.f32 %v867, %v890
        %v896 = vadd.f32 %v868, %v892
        %s897 = sld [smem:[#allocation7 + $0x19]]
        %v898 = vstv %s897
        %v899 = vmul.f32 %v898, %v798
        %v900 = vmul.f32 %v898, %v799
        %903 = vrot.lane.b32.xlu0 %v899, 124
        %v904 = vpop.permute.xlu0 %903
        %905 = vrot.lane.b32.xlu0 %v900, 124
        %v906 = vpop.permute.xlu0 %905
        %v909 = vadd.f32 %v881, %v904
        %v910 = vadd.f32 %v882, %v906
        %s911 = sld [smem:[#allocation7 + $0x4a]]
        %v912 = vstv %s911
        %v913 = vmul.f32 %v912, %v806
        %v914 = vmul.f32 %v912, %v807
        %917 = vrot.lane.b32.xlu0 %v913, 124
        %v918 = vpop.permute.xlu0 %917
        %919 = vrot.lane.b32.xlu0 %v914, 124
        %v920 = vpop.permute.xlu0 %919
        %v923 = vadd.f32 %v895, %v918
        %v924 = vadd.f32 %v896, %v920
        %s925 = sld [smem:[#allocation7 + $0x1a]]
        %v926 = vstv %s925
        %v927 = vmul.f32 %v926, %v798
        %v928 = vmul.f32 %v926, %v799
        %931 = vrot.lane.b32.xlu0 %v927, 123
        %v932 = vpop.permute.xlu0 %931
        %933 = vrot.lane.b32.xlu0 %v928, 123
        %v934 = vpop.permute.xlu0 %933
        %v937 = vadd.f32 %v909, %v932
        %v938 = vadd.f32 %v910, %v934
        %s939 = sld [smem:[#allocation7 + $0x4b]]
        %v940 = vstv %s939
        %v941 = vmul.f32 %v940, %v806
        %v942 = vmul.f32 %v940, %v807
        %945 = vrot.lane.b32.xlu0 %v941, 123
        %v946 = vpop.permute.xlu0 %945
        %947 = vrot.lane.b32.xlu0 %v942, 123
        %v948 = vpop.permute.xlu0 %947
        %v951 = vadd.f32 %v923, %v946
        %v952 = vadd.f32 %v924, %v948
        %s953 = sld [smem:[#allocation7 + $0x1b]]
        %v954 = vstv %s953
        %v955 = vmul.f32 %v954, %v798
        %v956 = vmul.f32 %v954, %v799
        %959 = vrot.lane.b32.xlu0 %v955, 122
        %v960 = vpop.permute.xlu0 %959
        %961 = vrot.lane.b32.xlu0 %v956, 122
        %v962 = vpop.permute.xlu0 %961
        %v965 = vadd.f32 %v937, %v960
        %v966 = vadd.f32 %v938, %v962
        %s967 = sld [smem:[#allocation7 + $0x4c]]
        %v968 = vstv %s967
        %v969 = vmul.f32 %v968, %v806
        %v970 = vmul.f32 %v968, %v807
        %973 = vrot.lane.b32.xlu0 %v969, 122
        %v974 = vpop.permute.xlu0 %973
        %975 = vrot.lane.b32.xlu0 %v970, 122
        %v976 = vpop.permute.xlu0 %975
        %v979 = vadd.f32 %v951, %v974
        %v980 = vadd.f32 %v952, %v976
        %s981 = sld [smem:[#allocation7 + $0x1c]]
        %v982 = vld [vmem:[#allocation2 + $0x4] sm:$0xff]
        %v983 = vld [vmem:[#allocation2 + $0xc] sm:$0xff]
        %v984 = vstv %s981
        %v985 = vmul.f32 %v984, %v982
        %v986 = vmul.f32 %v984, %v983
        %v987 = vadd.f32 %v965, %v985
        %v988 = vadd.f32 %v966, %v986
        %s989 = sld [smem:[#allocation7 + $0x4d]]
        %v990 = vld [vmem:[%s242 + $0x4] sm:$0xff]
        %v991 = vld [vmem:[%s242 + $0xc] sm:$0xff]
        %v992 = vstv %s989
        %v993 = vmul.f32 %v992, %v990
        %v994 = vmul.f32 %v992, %v991
        %v995 = vadd.f32 %v979, %v993
        %v996 = vadd.f32 %v980, %v994
        %s997 = sld [smem:[#allocation7 + $0x1d]]
        %v998 = vstv %s997
        %v999 = vmul.f32 %v998, %v982
        %v1000 = vmul.f32 %v998, %v983
        %1003 = vrot.lane.b32.xlu0 %v999, 127
        %v1004 = vpop.permute.xlu0 %1003
        %1005 = vrot.lane.b32.xlu0 %v1000, 127
        %v1006 = vpop.permute.xlu0 %1005
        %v1009 = vadd.f32 %v987, %v1004
        %v1010 = vadd.f32 %v988, %v1006
        %s1011 = sld [smem:[#allocation7 + $0x4e]]
        %v1012 = vstv %s1011
        %v1013 = vmul.f32 %v1012, %v990
        %v1014 = vmul.f32 %v1012, %v991
        %1017 = vrot.lane.b32.xlu0 %v1013, 127
        %v1018 = vpop.permute.xlu0 %1017
        %1019 = vrot.lane.b32.xlu0 %v1014, 127
        %v1020 = vpop.permute.xlu0 %1019
        %v1023 = vadd.f32 %v995, %v1018
        %v1024 = vadd.f32 %v996, %v1020
        %s1025 = sld [smem:[#allocation7 + $0x1e]]
        %v1026 = vstv %s1025
        %v1027 = vmul.f32 %v1026, %v982
        %v1028 = vmul.f32 %v1026, %v983
        %1031 = vrot.lane.b32.xlu0 %v1027, 126
        %v1032 = vpop.permute.xlu0 %1031
        %1033 = vrot.lane.b32.xlu0 %v1028, 126
        %v1034 = vpop.permute.xlu0 %1033
        %v1037 = vadd.f32 %v1009, %v1032
        %v1038 = vadd.f32 %v1010, %v1034
        %s1039 = sld [smem:[#allocation7 + $0x4f]]
        %v1040 = vstv %s1039
        %v1041 = vmul.f32 %v1040, %v990
        %v1042 = vmul.f32 %v1040, %v991
        %1045 = vrot.lane.b32.xlu0 %v1041, 126
        %v1046 = vpop.permute.xlu0 %1045
        %1047 = vrot.lane.b32.xlu0 %v1042, 126
        %v1048 = vpop.permute.xlu0 %1047
        %v1051 = vadd.f32 %v1023, %v1046
        %v1052 = vadd.f32 %v1024, %v1048
        %s1053 = sld [smem:[#allocation7 + $0x1f]]
        %v1054 = vstv %s1053
        %v1055 = vmul.f32 %v1054, %v982
        %v1056 = vmul.f32 %v1054, %v983
        %1059 = vrot.lane.b32.xlu0 %v1055, 125
        %v1060 = vpop.permute.xlu0 %1059
        %1061 = vrot.lane.b32.xlu0 %v1056, 125
        %v1062 = vpop.permute.xlu0 %1061
        %v1065 = vadd.f32 %v1037, %v1060
        %v1066 = vadd.f32 %v1038, %v1062
        %s1067 = sld [smem:[#allocation7 + $0x50]]
        %v1068 = vstv %s1067
        %v1069 = vmul.f32 %v1068, %v990
        %v1070 = vmul.f32 %v1068, %v991
        %1073 = vrot.lane.b32.xlu0 %v1069, 125
        %v1074 = vpop.permute.xlu0 %1073
        %1075 = vrot.lane.b32.xlu0 %v1070, 125
        %v1076 = vpop.permute.xlu0 %1075
        %v1079 = vadd.f32 %v1051, %v1074
        %v1080 = vadd.f32 %v1052, %v1076
        %s1081 = sld [smem:[#allocation7 + $0x20]]
        %v1082 = vstv %s1081
        %v1083 = vmul.f32 %v1082, %v982
        %v1084 = vmul.f32 %v1082, %v983
        %1087 = vrot.lane.b32.xlu0 %v1083, 124
        %v1088 = vpop.permute.xlu0 %1087
        %1089 = vrot.lane.b32.xlu0 %v1084, 124
        %v1090 = vpop.permute.xlu0 %1089
        %v1093 = vadd.f32 %v1065, %v1088
        %v1094 = vadd.f32 %v1066, %v1090
        %s1095 = sld [smem:[#allocation7 + $0x51]]
        %v1096 = vstv %s1095
        %v1097 = vmul.f32 %v1096, %v990
        %v1098 = vmul.f32 %v1096, %v991
        %1101 = vrot.lane.b32.xlu0 %v1097, 124
        %v1102 = vpop.permute.xlu0 %1101
        %1103 = vrot.lane.b32.xlu0 %v1098, 124
        %v1104 = vpop.permute.xlu0 %1103
        %v1107 = vadd.f32 %v1079, %v1102
        %v1108 = vadd.f32 %v1080, %v1104
        %s1109 = sld [smem:[#allocation7 + $0x21]]
        %v1110 = vstv %s1109
        %v1111 = vmul.f32 %v1110, %v982
        %v1112 = vmul.f32 %v1110, %v983
        %1115 = vrot.lane.b32.xlu0 %v1111, 123
        %v1116 = vpop.permute.xlu0 %1115
        %1117 = vrot.lane.b32.xlu0 %v1112, 123
        %v1118 = vpop.permute.xlu0 %1117
        %v1121 = vadd.f32 %v1093, %v1116
        %v1122 = vadd.f32 %v1094, %v1118
        %s1123 = sld [smem:[#allocation7 + $0x52]]
        %v1124 = vstv %s1123
        %v1125 = vmul.f32 %v1124, %v990
        %v1126 = vmul.f32 %v1124, %v991
        %1129 = vrot.lane.b32.xlu0 %v1125, 123
        %v1130 = vpop.permute.xlu0 %1129
        %1131 = vrot.lane.b32.xlu0 %v1126, 123
        %v1132 = vpop.permute.xlu0 %1131
        %v1135 = vadd.f32 %v1107, %v1130
        %v1136 = vadd.f32 %v1108, %v1132
        %s1137 = sld [smem:[#allocation7 + $0x22]]
        %v1138 = vstv %s1137
        %v1139 = vmul.f32 %v1138, %v982
        %v1140 = vmul.f32 %v1138, %v983
        %1143 = vrot.lane.b32.xlu0 %v1139, 122
        %v1144 = vpop.permute.xlu0 %1143
        %1145 = vrot.lane.b32.xlu0 %v1140, 122
        %v1146 = vpop.permute.xlu0 %1145
        %v1149 = vadd.f32 %v1121, %v1144
        %v1150 = vadd.f32 %v1122, %v1146
        %s1151 = sld [smem:[#allocation7 + $0x53]]
        %v1152 = vstv %s1151
        %v1153 = vmul.f32 %v1152, %v990
        %v1154 = vmul.f32 %v1152, %v991
        %1157 = vrot.lane.b32.xlu0 %v1153, 122
        %v1158 = vpop.permute.xlu0 %1157
        %1159 = vrot.lane.b32.xlu0 %v1154, 122
        %v1160 = vpop.permute.xlu0 %1159
        %v1163 = vadd.f32 %v1135, %v1158
        %v1164 = vadd.f32 %v1136, %v1160
        %s1165 = sld [smem:[#allocation7 + $0x23]]
        %v1166 = vld [vmem:[#allocation2 + $0x5] sm:$0xff]
        %v1167 = vld [vmem:[#allocation2 + $0xd] sm:$0xff]
        %v1168 = vstv %s1165
        %v1169 = vmul.f32 %v1168, %v1166
        %v1170 = vmul.f32 %v1168, %v1167
        %v1171 = vadd.f32 %v1149, %v1169
        %v1172 = vadd.f32 %v1150, %v1170
        %s1173 = sld [smem:[#allocation7 + $0x54]]
        %v1174 = vld [vmem:[%s242 + $0x5] sm:$0xff]
        %v1175 = vld [vmem:[%s242 + $0xd] sm:$0xff]
        %v1176 = vstv %s1173
        %v1177 = vmul.f32 %v1176, %v1174
        %v1178 = vmul.f32 %v1176, %v1175
        %v1179 = vadd.f32 %v1163, %v1177
        %v1180 = vadd.f32 %v1164, %v1178
        %s1181 = sld [smem:[#allocation7 + $0x24]]
        %v1182 = vstv %s1181
        %v1183 = vmul.f32 %v1182, %v1166
        %v1184 = vmul.f32 %v1182, %v1167
        %1187 = vrot.lane.b32.xlu0 %v1183, 127
        %v1188 = vpop.permute.xlu0 %1187
        %1189 = vrot.lane.b32.xlu0 %v1184, 127
        %v1190 = vpop.permute.xlu0 %1189
        %v1193 = vadd.f32 %v1171, %v1188
        %v1194 = vadd.f32 %v1172, %v1190
        %s1195 = sld [smem:[#allocation7 + $0x55]]
        %v1196 = vstv %s1195
        %v1197 = vmul.f32 %v1196, %v1174
        %v1198 = vmul.f32 %v1196, %v1175
        %1201 = vrot.lane.b32.xlu0 %v1197, 127
        %v1202 = vpop.permute.xlu0 %1201
        %1203 = vrot.lane.b32.xlu0 %v1198, 127
        %v1204 = vpop.permute.xlu0 %1203
        %v1207 = vadd.f32 %v1179, %v1202
        %v1208 = vadd.f32 %v1180, %v1204
        %s1209 = sld [smem:[#allocation7 + $0x25]]
        %v1210 = vstv %s1209
        %v1211 = vmul.f32 %v1210, %v1166
        %v1212 = vmul.f32 %v1210, %v1167
        %1215 = vrot.lane.b32.xlu0 %v1211, 126
        %v1216 = vpop.permute.xlu0 %1215
        %1217 = vrot.lane.b32.xlu0 %v1212, 126
        %v1218 = vpop.permute.xlu0 %1217
        %v1221 = vadd.f32 %v1193, %v1216
        %v1222 = vadd.f32 %v1194, %v1218
        %s1223 = sld [smem:[#allocation7 + $0x56]]
        %v1224 = vstv %s1223
        %v1225 = vmul.f32 %v1224, %v1174
        %v1226 = vmul.f32 %v1224, %v1175
        %1229 = vrot.lane.b32.xlu0 %v1225, 126
        %v1230 = vpop.permute.xlu0 %1229
        %1231 = vrot.lane.b32.xlu0 %v1226, 126
        %v1232 = vpop.permute.xlu0 %1231
        %v1235 = vadd.f32 %v1207, %v1230
        %v1236 = vadd.f32 %v1208, %v1232
        %s1237 = sld [smem:[#allocation7 + $0x26]]
        %v1238 = vstv %s1237
        %v1239 = vmul.f32 %v1238, %v1166
        %v1240 = vmul.f32 %v1238, %v1167
        %1243 = vrot.lane.b32.xlu0 %v1239, 125
        %v1244 = vpop.permute.xlu0 %1243
        %1245 = vrot.lane.b32.xlu0 %v1240, 125
        %v1246 = vpop.permute.xlu0 %1245
        %v1249 = vadd.f32 %v1221, %v1244
        %v1250 = vadd.f32 %v1222, %v1246
        %s1251 = sld [smem:[#allocation7 + $0x57]]
        %v1252 = vstv %s1251
        %v1253 = vmul.f32 %v1252, %v1174
        %v1254 = vmul.f32 %v1252, %v1175
        %1257 = vrot.lane.b32.xlu0 %v1253, 125
        %v1258 = vpop.permute.xlu0 %1257
        %1259 = vrot.lane.b32.xlu0 %v1254, 125
        %v1260 = vpop.permute.xlu0 %1259
        %v1263 = vadd.f32 %v1235, %v1258
        %v1264 = vadd.f32 %v1236, %v1260
        %s1265 = sld [smem:[#allocation7 + $0x27]]
        %v1266 = vstv %s1265
        %v1267 = vmul.f32 %v1266, %v1166
        %v1268 = vmul.f32 %v1266, %v1167
        %1271 = vrot.lane.b32.xlu0 %v1267, 124
        %v1272 = vpop.permute.xlu0 %1271
        %1273 = vrot.lane.b32.xlu0 %v1268, 124
        %v1274 = vpop.permute.xlu0 %1273
        %v1277 = vadd.f32 %v1249, %v1272
        %v1278 = vadd.f32 %v1250, %v1274
        %s1279 = sld [smem:[#allocation7 + $0x58]]
        %v1280 = vstv %s1279
        %v1281 = vmul.f32 %v1280, %v1174
        %v1282 = vmul.f32 %v1280, %v1175
        %1285 = vrot.lane.b32.xlu0 %v1281, 124
        %v1286 = vpop.permute.xlu0 %1285
        %1287 = vrot.lane.b32.xlu0 %v1282, 124
        %v1288 = vpop.permute.xlu0 %1287
        %v1291 = vadd.f32 %v1263, %v1286
        %v1292 = vadd.f32 %v1264, %v1288
        %s1293 = sld [smem:[#allocation7 + $0x28]]
        %v1294 = vstv %s1293
        %v1295 = vmul.f32 %v1294, %v1166
        %v1296 = vmul.f32 %v1294, %v1167
        %1299 = vrot.lane.b32.xlu0 %v1295, 123
        %v1300 = vpop.permute.xlu0 %1299
        %1301 = vrot.lane.b32.xlu0 %v1296, 123
        %v1302 = vpop.permute.xlu0 %1301
        %v1305 = vadd.f32 %v1277, %v1300
        %v1306 = vadd.f32 %v1278, %v1302
        %s1307 = sld [smem:[#allocation7 + $0x59]]
        %v1308 = vstv %s1307
        %v1309 = vmul.f32 %v1308, %v1174
        %v1310 = vmul.f32 %v1308, %v1175
        %1313 = vrot.lane.b32.xlu0 %v1309, 123
        %v1314 = vpop.permute.xlu0 %1313
        %1315 = vrot.lane.b32.xlu0 %v1310, 123
        %v1316 = vpop.permute.xlu0 %1315
        %v1319 = vadd.f32 %v1291, %v1314
        %v1320 = vadd.f32 %v1292, %v1316
        %s1321 = sld [smem:[#allocation7 + $0x29]]
        %v1322 = vstv %s1321
        %v1323 = vmul.f32 %v1322, %v1166
        %v1324 = vmul.f32 %v1322, %v1167
        %1327 = vrot.lane.b32.xlu0 %v1323, 122
        %v1328 = vpop.permute.xlu0 %1327
        %1329 = vrot.lane.b32.xlu0 %v1324, 122
        %v1330 = vpop.permute.xlu0 %1329
        %v1333 = vadd.f32 %v1305, %v1328
        %v1334 = vadd.f32 %v1306, %v1330
        %s1335 = sld [smem:[#allocation7 + $0x5a]]
        %v1336 = vstv %s1335
        %v1337 = vmul.f32 %v1336, %v1174
        %v1338 = vmul.f32 %v1336, %v1175
        %1341 = vrot.lane.b32.xlu0 %v1337, 122
        %v1342 = vpop.permute.xlu0 %1341
        %1343 = vrot.lane.b32.xlu0 %v1338, 122
        %v1344 = vpop.permute.xlu0 %1343
        %v1347 = vadd.f32 %v1319, %v1342
        %v1348 = vadd.f32 %v1320, %v1344
        %s1349 = sld [smem:[#allocation7 + $0x2a]]
        %v1350 = vld [vmem:[#allocation2 + $0x6] sm:$0xff]
        %v1351 = vld [vmem:[#allocation2 + $0xe] sm:$0xff]
        %v1352 = vstv %s1349
        %v1353 = vmul.f32 %v1352, %v1350
        %v1354 = vmul.f32 %v1352, %v1351
        %v1355 = vadd.f32 %v1333, %v1353
        %v1356 = vadd.f32 %v1334, %v1354
        %s1357 = sld [smem:[#allocation7 + $0x5b]]
        %v1358 = vld [vmem:[%s242 + $0x6] sm:$0xff]
        %v1359 = vld [vmem:[%s242 + $0xe] sm:$0xff]
        %v1360 = vstv %s1357
        %v1361 = vmul.f32 %v1360, %v1358
        %v1362 = vmul.f32 %v1360, %v1359
        %v1363 = vadd.f32 %v1347, %v1361
        %v1364 = vadd.f32 %v1348, %v1362
        %s1365 = sld [smem:[#allocation7 + $0x2b]]
        %v1366 = vstv %s1365
        %v1367 = vmul.f32 %v1366, %v1350
        %v1368 = vmul.f32 %v1366, %v1351
        %1371 = vrot.lane.b32.xlu0 %v1367, 127
        %v1372 = vpop.permute.xlu0 %1371
        %1373 = vrot.lane.b32.xlu0 %v1368, 127
        %v1374 = vpop.permute.xlu0 %1373
        %v1377 = vadd.f32 %v1355, %v1372
        %v1378 = vadd.f32 %v1356, %v1374
        %s1379 = sld [smem:[#allocation7 + $0x5c]]
        %v1380 = vstv %s1379
        %v1381 = vmul.f32 %v1380, %v1358
        %v1382 = vmul.f32 %v1380, %v1359
        %1385 = vrot.lane.b32.xlu0 %v1381, 127
        %v1386 = vpop.permute.xlu0 %1385
        %1387 = vrot.lane.b32.xlu0 %v1382, 127
        %v1388 = vpop.permute.xlu0 %1387
        %v1391 = vadd.f32 %v1363, %v1386
        %v1392 = vadd.f32 %v1364, %v1388
        %s1393 = sld [smem:[#allocation7 + $0x2c]]
        %v1394 = vstv %s1393
        %v1395 = vmul.f32 %v1394, %v1350
        %v1396 = vmul.f32 %v1394, %v1351
        %1399 = vrot.lane.b32.xlu0 %v1395, 126
        %v1400 = vpop.permute.xlu0 %1399
        %1401 = vrot.lane.b32.xlu0 %v1396, 126
        %v1402 = vpop.permute.xlu0 %1401
        %v1405 = vadd.f32 %v1377, %v1400
        %v1406 = vadd.f32 %v1378, %v1402
        %s1407 = sld [smem:[#allocation7 + $0x5d]]
        %v1408 = vstv %s1407
        %v1409 = vmul.f32 %v1408, %v1358
        %v1410 = vmul.f32 %v1408, %v1359
        %1413 = vrot.lane.b32.xlu0 %v1409, 126
        %v1414 = vpop.permute.xlu0 %1413
        %1415 = vrot.lane.b32.xlu0 %v1410, 126
        %v1416 = vpop.permute.xlu0 %1415
        %v1419 = vadd.f32 %v1391, %v1414
        %v1420 = vadd.f32 %v1392, %v1416
        %s1421 = sld [smem:[#allocation7 + $0x2d]]
        %v1422 = vstv %s1421
        %v1423 = vmul.f32 %v1422, %v1350
        %v1424 = vmul.f32 %v1422, %v1351
        %1427 = vrot.lane.b32.xlu0 %v1423, 125
        %v1428 = vpop.permute.xlu0 %1427
        %1429 = vrot.lane.b32.xlu0 %v1424, 125
        %v1430 = vpop.permute.xlu0 %1429
        %v1433 = vadd.f32 %v1405, %v1428
        %v1434 = vadd.f32 %v1406, %v1430
        %s1435 = sld [smem:[#allocation7 + $0x5e]]
        %v1436 = vstv %s1435
        %v1437 = vmul.f32 %v1436, %v1358
        %v1438 = vmul.f32 %v1436, %v1359
        %1441 = vrot.lane.b32.xlu0 %v1437, 125
        %v1442 = vpop.permute.xlu0 %1441
        %1443 = vrot.lane.b32.xlu0 %v1438, 125
        %v1444 = vpop.permute.xlu0 %1443
        %v1447 = vadd.f32 %v1419, %v1442
        %v1448 = vadd.f32 %v1420, %v1444
        %s1449 = sld [smem:[#allocation7 + $0x2e]]
        %v1450 = vstv %s1449
        %v1451 = vmul.f32 %v1450, %v1350
        %v1452 = vmul.f32 %v1450, %v1351
        %1455 = vrot.lane.b32.xlu0 %v1451, 124
        %v1456 = vpop.permute.xlu0 %1455
        %1457 = vrot.lane.b32.xlu0 %v1452, 124
        %v1458 = vpop.permute.xlu0 %1457
        %v1461 = vadd.f32 %v1433, %v1456
        %v1462 = vadd.f32 %v1434, %v1458
        %s1463 = sld [smem:[#allocation7 + $0x5f]]
        %v1464 = vstv %s1463
        %v1465 = vmul.f32 %v1464, %v1358
        %v1466 = vmul.f32 %v1464, %v1359
        %1469 = vrot.lane.b32.xlu0 %v1465, 124
        %v1470 = vpop.permute.xlu0 %1469
        %1471 = vrot.lane.b32.xlu0 %v1466, 124
        %v1472 = vpop.permute.xlu0 %1471
        %v1475 = vadd.f32 %v1447, %v1470
        %v1476 = vadd.f32 %v1448, %v1472
        %s1477 = sld [smem:[#allocation7 + $0x2f]]
        %v1478 = vstv %s1477
        %v1479 = vmul.f32 %v1478, %v1350
        %v1480 = vmul.f32 %v1478, %v1351
        %1483 = vrot.lane.b32.xlu0 %v1479, 123
        %v1484 = vpop.permute.xlu0 %1483
        %1485 = vrot.lane.b32.xlu0 %v1480, 123
        %v1486 = vpop.permute.xlu0 %1485
        %v1489 = vadd.f32 %v1461, %v1484
        %v1490 = vadd.f32 %v1462, %v1486
        %s1491 = sld [smem:[#allocation7 + $0x60]]
        %v1492 = vstv %s1491
        %v1493 = vmul.f32 %v1492, %v1358
        %v1494 = vmul.f32 %v1492, %v1359
        %1497 = vrot.lane.b32.xlu0 %v1493, 123
        %v1498 = vpop.permute.xlu0 %1497
        %1499 = vrot.lane.b32.xlu0 %v1494, 123
        %v1500 = vpop.permute.xlu0 %1499
        %v1503 = vadd.f32 %v1475, %v1498
        %v1504 = vadd.f32 %v1476, %v1500
        %s1505 = sld [smem:[#allocation7 + $0x30]]
        %v1506 = vstv %s1505
        %v1507 = vmul.f32 %v1506, %v1350
        %v1508 = vmul.f32 %v1506, %v1351
        %1511 = vrot.lane.b32.xlu0 %v1507, 122
        %v1512 = vpop.permute.xlu0 %1511
        %1513 = vrot.lane.b32.xlu0 %v1508, 122
        %v1514 = vpop.permute.xlu0 %1513
        %v1517 = vadd.f32 %v1489, %v1512
        %v1518 = vadd.f32 %v1490, %v1514
        %s1519 = sld [smem:[#allocation7 + $0x61]]
        %v1520 = vstv %s1519
        %v1521 = vmul.f32 %v1520, %v1358
        %v1522 = vmul.f32 %v1520, %v1359
        %1525 = vrot.lane.b32.xlu0 %v1521, 122
        %v1526 = vpop.permute.xlu0 %1525
        %1527 = vrot.lane.b32.xlu0 %v1522, 122
        %v1528 = vpop.permute.xlu0 %1527
        %v1531 = vadd.f32 %v1503, %v1526
        %v1532 = vadd.f32 %v1504, %v1528
        %v1533 = vadd.f32 %v1517, %v1531
        %v1534 = vadd.f32 %v1518, %v1532
        %v1535 = vxor.u32 %v1533, 2147483648
        %v1536 = vxor.u32 %v1534, 2147483648
        %v1537 = vmul.f32 %v1535, 1.442695
        %v1538 = vpow.pop %v1537
        %v1539 = vmul.f32 %v1536, 1.442695
        %v1540 = vpow.pop %v1539
        %v1541 = vadd.f32 %v1538, 1.0
        %v1542 = vadd.f32 %v1540, 1.0
        %v1543 = vrcp.pop %v1541
        %v1544 = vmul.f32 1.0, %v1543
        %v1545 = vrcp.pop %v1542
        %v1546 = vmul.f32 1.0, %v1545
        %1547 = vst.msk [vmem:[%s175] sm:$0xff] %vm184, %v1544
        %1548 = vst.msk [vmem:[%s175 + $0x8] sm:$0xff] %vm184, %v1546
        %s1549 = sand.u32 %s75, 1
        %s1550 = scalar_lea.sflag [#allocation5], %s1549
        %s1551 = sand.u32 %s75, 1
        %s1552 = smul.addr %s1551, 16
        %s1553 = scalar_lea.vmem [#allocation8], %s1552
        // Predicated region
        $region37: #{spatial_attention.1} parent=27 // pred_check
          %p1554 = pneg %p85
        $region38: #{spatial_attention.1} parent=27 // pred_check_branch
          %1556 = sbr.rel (%p1554) target = $region40
        $region39: #{spatial_attention.1} parent=27 // pred_region
          %s1558 = ssub.s32 256, 256
          %1559 = vsyncadd %s1550, %s1558
          %s1560 = smul.addr %s20, 2
          %s1561 = smul.addr %s1560, 128
          %s1562 = scalar_lea.hbm %s2, %s1561
          %s1563 = sshll.u32 %s1553, 4
          %s1564 = int_to_ptr.vmem [resolvable:$true] %s1563
          %1569 = dma.vmem_to_hbm [thread:$0]  %s1564, 256, %s1562, %s1550, 128, 128, 8
        $region40: #{spatial_attention.1} parent=27 // pred_fallthru
          _
      $region28: #{spatial_attention.1} parent=5 // pred_fallthru
        _
      %p1570 = scmp.le.s32.totalorder 2, %s15
      // Predicated region
      $region41: #{spatial_attention.1} parent=5 // pred_check
        %p1571 = pneg %p1570
      $region42: #{spatial_attention.1} parent=5 // pred_check_branch
        %1573 = sbr.rel (%p1571) target = $region44
      $region43: #{spatial_attention.1} parent=5 // pred_region
        %s1574 = ssub.s32 %s15, 2
        // Predicated region
        $region45: #{spatial_attention.1} parent=43 // pred_check
          %p1575 = pneg %p91
        $region46: #{spatial_attention.1} parent=43 // pred_check_branch
          %1577 = sbr.rel (%p1575) target = $region48
        $region47: #{spatial_attention.1} parent=43 // pred_region
          %s1578 = sand.u32 %s76, 1
          %s1579 = scalar_lea.sflag [#allocation5], %s1578
          %s1580 = sand.u32 %s76, 1
          %s1581 = smul.addr %s1580, 16
          %s1582 = scalar_lea.vmem [#allocation8], %s1581
          %1583 = dma.done %s1579, 256
        $region48: #{spatial_attention.1} parent=43 // pred_fallthru
          _
      $region44: #{spatial_attention.1} parent=5 // pred_fallthru
        _
    $region6: #{spatial_attention.1} parent=1 // loop_footer
      %s19 = sadd.s32 1, %s15
    $region7: #{spatial_attention.1} parent=1 // loop_footer_branch
      %14 = sbr.rel target = $region3
    $region8: #{spatial_attention.1} parent=1 // loop_exit
      _
    %1584 = vsyncpa [#allocation4], 1
    %s1585 = scalar_lea.sflag [#allocation4], 1
    %1586 = vsyncpa %s1585, 1
    %1587 = vsyncpa [#allocation5], 1
    %s1588 = scalar_lea.sflag [#allocation5], 1
    %1589 = vsyncpa %s1588, 1
    %1590 = vsyncpa [#allocation6], 1
    %s1591 = scalar_lea.sflag [#allocation6], 1
    %1592 = vsyncpa %s1591, 1

</llo_original>
